<compile_context>
chip_gen: v6e
topology: v6e:2x2x1
jax: 0.10.0
libtpu: 0.0.40
codegen_flags: <defaults>
</compile_context>

<pallas_src>
import functools
import math

import jax
import jax.numpy as jnp
from jax import lax
from jax.experimental import pallas as pl
from jax.experimental.pallas import tpu as pltpu

LN_EPS = 1e-5  # torch.nn.LayerNorm default


# ----------------------------- Pallas kernel ------------------------------ #
def _encoder_layer_kernel(S, H, dqk, hs, mm_dtype,
                          x_ref,
                          wqkv_ref, bqkv_ref, wo_ref, bo_ref,
                          g1_ref, be1_ref,
                          w1_ref, b1_ref, w2_ref, b2_ref,
                          g2_ref, be2_ref,
                          o_ref):
    HP = H * hs                                  # lane-aligned per-head stride
    inv_scale = 1.0 / math.sqrt(dqk)             # temp / query.size(-1)**0.5

    x = x_ref[0].astype(jnp.float32)              # (S, D)
    D = x.shape[-1]
    xm = x.astype(mm_dtype)

    # --- fused Q/K/V projection: ONE lane-dense matmul + ONE fused bias add ---
    qkv = jnp.dot(xm, wqkv_ref[...], preferred_element_type=jnp.float32)
    qkv = qkv + bqkv_ref[...]                     # (S, 3*HP) f32
    qkv_mm = qkv.astype(mm_dtype)                 # single cast for all heads

    # --- per-head attention, accumulated straight into the output projection ---
    att = jnp.zeros((S, D), jnp.float32)
    for h in range(H):                            # static, small H
        c0 = h * hs                               # 128-lane aligned offset
        q = qkv_mm[:, c0:c0 + hs]                 # (S, hs)
        k = qkv_mm[:, HP + c0:HP + c0 + hs]
        v = qkv_mm[:, 2 * HP + c0:2 * HP + c0 + hs]
        # scores = q @ k^T without materializing a transpose (trans_b form);
        # zero-padded head columns contribute nothing.
        s = lax.dot_general(q, k, (((1,), (1,)), ((), ())),
                            preferred_element_type=jnp.float32) * inv_scale
        s = s - jnp.max(s, axis=-1, keepdims=True)
        e = jnp.exp(s)
        p = e * pl.reciprocal(jnp.sum(e, axis=-1, keepdims=True), approx=True)
        ctx = jnp.dot(p.astype(mm_dtype), v, preferred_element_type=jnp.float32)
        # partial-sum into the output projection: ctx_h @ wo[h*hs:(h+1)*hs, :]
        att = att + jnp.dot(ctx.astype(mm_dtype), wo_ref[c0:c0 + hs, :],
                            preferred_element_type=jnp.float32)
    att = att + bo_ref[...]                       # wo bias added once

    # --- residual + LayerNorm (attention sublayer), one-pass stats, f32 ---
    y = x + att
    mu = jnp.mean(y, axis=-1, keepdims=True)
    var = jnp.mean(y * y, axis=-1, keepdims=True) - mu * mu
    y = (y - mu) * lax.rsqrt(var + LN_EPS) * g1_ref[...] + be1_ref[...]

    # --- feed-forward: Linear -> ReLU -> Linear ---
    h1 = jnp.dot(y.astype(mm_dtype), w1_ref[...],
                 preferred_element_type=jnp.float32) + b1_ref[...]
    h1 = jnp.maximum(h1, 0.0)
    ff = jnp.dot(h1.astype(mm_dtype), w2_ref[...],
                 preferred_element_type=jnp.float32) + b2_ref[...]

    # --- residual + LayerNorm (feed-forward sublayer), one-pass stats ---
    z = y + ff
    mu = jnp.mean(z, axis=-1, keepdims=True)
    var = jnp.mean(z * z, axis=-1, keepdims=True) - mu * mu
    z = (z - mu) * lax.rsqrt(var + LN_EPS) * g2_ref[...] + be2_ref[...]

    o_ref[0] = z.astype(o_ref.dtype)


# ---------------------- one-time parameter preparation --------------------- #
def prepare_params(p, *, matmul_dtype=jnp.bfloat16, pad_heads=True):
    """Fuse per-head Q/K/V weights into one lane-dense operand, lane-align each
    head block (pad head dim to a multiple of 128), pre-cast matmul weights.
    Call ONCE outside the jitted forward."""
    H, D, dqk = p["wq"].shape
    hs = dqk
    if pad_heads and dqk % 128 != 0:
        hs = ((dqk + 127) // 128) * 128           # lane-aligned head stride
    HP = H * hs

    def fuse_w(w):                                # (H, D, dqk) -> (D, H*hs)
        wt = jnp.transpose(w, (1, 0, 2))          # (D, H, dqk)
        if hs != dqk:
            wt = jnp.pad(wt, ((0, 0), (0, 0), (0, hs - dqk)))
        return wt.reshape(D, HP)

    def fuse_b(b):                                # (H, 1, dqk) -> (1, H*hs)
        bt = jnp.transpose(b, (1, 0, 2))          # (1, H, dqk)
        if hs != dqk:
            bt = jnp.pad(bt, ((0, 0), (0, 0), (0, hs - dqk)))
        return bt.reshape(1, HP)

    wo = p["wo"].reshape(H, dqk, D)               # pad wo rows per head to hs
    if hs != dqk:
        wo = jnp.pad(wo, ((0, 0), (0, hs - dqk), (0, 0)))
    wo = wo.reshape(HP, D)

    f32 = lambda a: a.astype(jnp.float32)
    fused = dict(
        wqkv=jnp.concatenate([fuse_w(p["wq"]), fuse_w(p["wk"]), fuse_w(p["wv"])],
                             axis=1).astype(matmul_dtype),        # (D, 3*H*hs)
        bqkv=jnp.concatenate([fuse_b(p["bq"]), fuse_b(p["bk"]), fuse_b(p["bv"])],
                             axis=1).astype(jnp.float32),         # (1, 3*H*hs)
        wo=wo.astype(matmul_dtype), bo=f32(p["bo"]),
        g1=f32(p["g1"]), be1=f32(p["be1"]),
        w1=p["w1"].astype(matmul_dtype), b1=f32(p["b1"]),
        w2=p["w2"].astype(matmul_dtype), b2=f32(p["b2"]),
        g2=f32(p["g2"]), be2=f32(p["be2"]),
    )
    cfg = dict(H=int(H), dqk=int(dqk), hs=int(hs), matmul_dtype=matmul_dtype)
    return fused, cfg


# ------------------------------- wrapper ----------------------------------- #
def encoder_layer_forward(x, fp, *, H, dqk, hs, matmul_dtype=jnp.bfloat16):
    """x: (B, S, D); fp: pre-fused params from prepare_params()."""
    B, S, D = x.shape
    F = fp["w1"].shape[1]
    HP = H * hs

    weights = (fp["wqkv"], fp["bqkv"], fp["wo"], fp["bo"],
               fp["g1"], fp["be1"], fp["w1"], fp["b1"],
               fp["w2"], fp["b2"], fp["g2"], fp["be2"])

    # Single-buffered weights: whole array resident in VMEM once (constant
    # across grid steps) -- no pipeline double-buffering of weight bytes.
    w_spec = pl.BlockSpec(memory_space=pltpu.MemorySpace.VMEM)

    # VMEM budget from the actual resident buffers:
    #   weights (once) + double-buffered x/out blocks + in-kernel intermediates.
    itemsize = jnp.dtype(x.dtype).itemsize
    mm_size = jnp.dtype(matmul_dtype).itemsize
    w_bytes = sum(w.size * w.dtype.itemsize for w in weights)
    act_bytes = 2 * 2 * S * D * itemsize                       # x + out, 2 bufs
    inter_bytes = (S * 3 * HP * (4 + mm_size)                  # qkv f32 + mm copy
                   + S * F * (4 + mm_size)                     # h1
                   + 2 * S * S * 4                             # scores / probs
                   + 6 * S * D * 4)                            # att/y/z/temps
    vmem_bytes = w_bytes + act_bytes + inter_bytes + (1 << 22)
    try:
        cap = int(pltpu.get_tpu_info().vmem_capacity_bytes)
    except Exception:
        cap = 64 * 1024 * 1024                                 # v7x floor
    vmem_bytes = int(max(32 * 1024 * 1024, min(vmem_bytes, cap - (4 << 20))))

    kernel = functools.partial(_encoder_layer_kernel, S, H, dqk, hs, matmul_dtype)
    out = pl.pallas_call(
        kernel,
        out_shape=jax.ShapeDtypeStruct((B, S, D), x.dtype),
        grid=(B,),                                             # 1 batch / step
        in_specs=[pl.BlockSpec((1, S, D), lambda i: (i, 0, 0))]
                 + [w_spec] * len(weights),
        out_specs=pl.BlockSpec((1, S, D), lambda i: (i, 0, 0)),
        compiler_params=pltpu.CompilerParams(
            dimension_semantics=("parallel",),
            vmem_limit_bytes=vmem_bytes),
    )(x, *weights)
    return out


# ---------------------------- parameter init ------------------------------- #
def init_layer_params(key, D, H, F):
    """Mirrors the per-head torch.nn.Linear layout of MultiHeadAttention."""
    dqk = max(D // H, 1)
    ks = jax.random.split(key, 12)

    def u(k, shape, fan_in):
        lim = 1.0 / math.sqrt(fan_in)
        return jax.random.uniform(k, shape, jnp.float32, -lim, lim)

    return dict(
        wq=u(ks[0], (H, D, dqk), D), wk=u(ks[1], (H, D, dqk), D),
        wv=u(ks[2], (H, D, dqk), D),
        bq=u(ks[3], (H, 1, dqk), D), bk=u(ks[4], (H, 1, dqk), D),
        bv=u(ks[5], (H, 1, dqk), D),
        wo=u(ks[6], (H * dqk, D), H * dqk), bo=u(ks[7], (1, D), H * dqk),
        g1=jnp.ones((1, D), jnp.float32), be1=jnp.zeros((1, D), jnp.float32),
        w1=u(ks[8], (D, F), D), b1=u(ks[9], (1, F), D),
        w2=u(ks[10], (F, D), F), b2=u(ks[11], (1, D), F),
        g2=jnp.ones((1, D), jnp.float32), be2=jnp.zeros((1, D), jnp.float32),
    )


# --------------------------------- main ------------------------------------ #
if __name__ == "__main__":
    B, S, D = 2, 8, 32          # batch, seq, dim_mdl
    H, F = 4, 64                # N_heads, dim_ff

    root = jax.random.PRNGKey(0)
    kx, kp = jax.random.split(root)
    x = jax.random.normal(kx, (B, S, D), jnp.float32)

    params = init_layer_params(kp, D, H, F)
    fused, cfg = prepare_params(params)         # fuse / cast weights ONCE
    fused = jax.tree_util.tree_map(jax.block_until_ready, fused)

    fwd = jax.jit(functools.partial(encoder_layer_forward, **cfg))
    out = fwd(x, fused)
    jax.block_until_ready(out)

    assert out.shape == (B, S, D)
    assert bool(jnp.all(jnp.isfinite(out)))
    print("KERNEL_OK")
</pallas_src>

<mosaic_0001>
module attributes {stable_mosaic.version = 11 : i64} {
  func.func @_encoder_layer_kernel(%arg0: i32, %arg1: memref<1x8x32xf32, #tpu.memory_space<vmem>>, %arg2: memref<32x1536xbf16, #tpu.memory_space<vmem>>, %arg3: memref<1x1536xf32, #tpu.memory_space<vmem>>, %arg4: memref<512x32xbf16, #tpu.memory_space<vmem>>, %arg5: memref<1x32xf32, #tpu.memory_space<vmem>>, %arg6: memref<1x32xf32, #tpu.memory_space<vmem>>, %arg7: memref<1x32xf32, #tpu.memory_space<vmem>>, %arg8: memref<32x64xbf16, #tpu.memory_space<vmem>>, %arg9: memref<1x64xf32, #tpu.memory_space<vmem>>, %arg10: memref<64x32xbf16, #tpu.memory_space<vmem>>, %arg11: memref<1x32xf32, #tpu.memory_space<vmem>>, %arg12: memref<1x32xf32, #tpu.memory_space<vmem>>, %arg13: memref<1x32xf32, #tpu.memory_space<vmem>>, %arg14: memref<1x8x32xf32, #tpu.memory_space<vmem>>) attributes {dimension_semantics = [#tpu.dimension_semantics<parallel>], iteration_bounds = array<i64: 2>, scalar_prefetch = 0 : i64, scratch_operands = 0 : i64, tpu.core_type = #tpu.core_type<tc>, window_params = [{transform_indices = @transform_0, window_bounds = array<i64: 1, 8, 32>}, {pipeline_mode = #tpu.pipeline_mode<synchronous>, transform_indices = @transform_1, window_bounds = array<i64: 32, 1536>}, {pipeline_mode = #tpu.pipeline_mode<synchronous>, transform_indices = @transform_2, window_bounds = array<i64: 1, 1536>}, {pipeline_mode = #tpu.pipeline_mode<synchronous>, transform_indices = @transform_3, window_bounds = array<i64: 512, 32>}, {pipeline_mode = #tpu.pipeline_mode<synchronous>, transform_indices = @transform_4, window_bounds = array<i64: 1, 32>}, {pipeline_mode = #tpu.pipeline_mode<synchronous>, transform_indices = @transform_5, window_bounds = array<i64: 1, 32>}, {pipeline_mode = #tpu.pipeline_mode<synchronous>, transform_indices = @transform_6, window_bounds = array<i64: 1, 32>}, {pipeline_mode = #tpu.pipeline_mode<synchronous>, transform_indices = @transform_7, window_bounds = array<i64: 32, 64>}, {pipeline_mode = #tpu.pipeline_mode<synchronous>, transform_indices = @transform_8, window_bounds = array<i64: 1, 64>}, {pipeline_mode = #tpu.pipeline_mode<synchronous>, transform_indices = @transform_9, window_bounds = array<i64: 64, 32>}, {pipeline_mode = #tpu.pipeline_mode<synchronous>, transform_indices = @transform_10, window_bounds = array<i64: 1, 32>}, {pipeline_mode = #tpu.pipeline_mode<synchronous>, transform_indices = @transform_11, window_bounds = array<i64: 1, 32>}, {pipeline_mode = #tpu.pipeline_mode<synchronous>, transform_indices = @transform_12, window_bounds = array<i64: 1, 32>}, {transform_indices = @transform_13, window_bounds = array<i64: 1, 8, 32>}]} {
    %c0 = arith.constant 0 : index
    %c0_0 = arith.constant 0 : index
    %c0_1 = arith.constant 0 : index
    %0 = vector.load %arg1[%c0, %c0_0, %c0_1] : memref<1x8x32xf32, #tpu.memory_space<vmem>>, vector<1x8x32xf32>
    %1 = vector.shape_cast %0 : vector<1x8x32xf32> to vector<8x32xf32>
    %2 = arith.truncf %1 : vector<8x32xf32> to vector<8x32xbf16>
    %c0_2 = arith.constant 0 : index
    %c0_3 = arith.constant 0 : index
    %3 = vector.load %arg2[%c0_2, %c0_3] : memref<32x1536xbf16, #tpu.memory_space<vmem>>, vector<32x1536xbf16>
    %cst = arith.constant dense<0.000000e+00> : vector<8x1536xf32>
    %4 = tpu.matmul %2, %3, %cst {dimension_numbers = #tpu.dot_dimension_numbers<[1], [0], [0], [1], [0, 0, 1, 1], [], []>} : vector<8x32xbf16>, vector<32x1536xbf16>, vector<8x1536xf32> -> vector<8x1536xf32>
    %c0_4 = arith.constant 0 : index
    %c0_5 = arith.constant 0 : index
    %5 = vector.load %arg3[%c0_4, %c0_5] : memref<1x1536xf32, #tpu.memory_space<vmem>>, vector<1x1536xf32>
    %6 = vector.broadcast %5 : vector<1x1536xf32> to vector<8x1536xf32>
    %7 = arith.addf %4, %6 : vector<8x1536xf32>
    %8 = arith.truncf %7 : vector<8x1536xf32> to vector<8x1536xbf16>
    %cst_6 = arith.constant 0.000000e+00 : f32
    %9 = vector.broadcast %cst_6 : f32 to vector<8x32xf32>
    %10 = vector.extract_strided_slice %8 {offsets = [0, 0], sizes = [8, 128], strides = [1, 1]} : vector<8x1536xbf16> to vector<8x128xbf16>
    %11 = vector.extract_strided_slice %8 {offsets = [0, 512], sizes = [8, 128], strides = [1, 1]} : vector<8x1536xbf16> to vector<8x128xbf16>
    %12 = vector.extract_strided_slice %8 {offsets = [0, 1024], sizes = [8, 128], strides = [1, 1]} : vector<8x1536xbf16> to vector<8x128xbf16>
    %cst_7 = arith.constant dense<0.000000e+00> : vector<8x8xf32>
    %13 = tpu.matmul %10, %11, %cst_7 {dimension_numbers = #tpu.dot_dimension_numbers<[1], [1], [0], [0], [0, 0, 1, 0], [], []>} : vector<8x128xbf16>, vector<8x128xbf16>, vector<8x8xf32> -> vector<8x8xf32>
    %cst_8 = arith.constant 0.353553385 : f32
    %14 = vector.broadcast %cst_8 : f32 to vector<8x8xf32>
    %15 = arith.mulf %13, %14 : vector<8x8xf32>
    %cst_9 = arith.constant dense<0xFF800000> : vector<8xf32>
    %16 = vector.multi_reduction <maximumf>, %15, %cst_9 [1] : vector<8x8xf32> to vector<8xf32>
    %17 = vector.shape_cast %16 : vector<8xf32> to vector<8x1xf32>
    %18 = vector.broadcast %17 : vector<8x1xf32> to vector<8x8xf32>
    %19 = arith.subf %15, %18 : vector<8x8xf32>
    %20 = math.exp %19 : vector<8x8xf32>
    %cst_10 = arith.constant dense<0.000000e+00> : vector<8xf32>
    %21 = vector.multi_reduction <add>, %20, %cst_10 [1] : vector<8x8xf32> to vector<8xf32>
    %22 = vector.shape_cast %21 : vector<8xf32> to vector<8x1xf32>
    %23 = tpu.reciprocal %22 {approx = true} : vector<8x1xf32> -> vector<8x1xf32>
    %24 = vector.broadcast %23 : vector<8x1xf32> to vector<8x8xf32>
    %25 = arith.mulf %20, %24 : vector<8x8xf32>
    %26 = arith.truncf %25 : vector<8x8xf32> to vector<8x8xbf16>
    %cst_11 = arith.constant dense<0.000000e+00> : vector<8x128xf32>
    %27 = tpu.matmul %26, %12, %cst_11 {dimension_numbers = #tpu.dot_dimension_numbers<[1], [0], [0], [1], [0, 0, 1, 1], [], []>} : vector<8x8xbf16>, vector<8x128xbf16>, vector<8x128xf32> -> vector<8x128xf32>
    %28 = arith.truncf %27 : vector<8x128xf32> to vector<8x128xbf16>
    %c0_12 = arith.constant 0 : index
    %c0_13 = arith.constant 0 : index
    %29 = vector.load %arg4[%c0_12, %c0_13] : memref<512x32xbf16, #tpu.memory_space<vmem>>, vector<128x32xbf16>
    %cst_14 = arith.constant dense<0.000000e+00> : vector<8x32xf32>
    %30 = tpu.matmul %28, %29, %cst_14 {dimension_numbers = #tpu.dot_dimension_numbers<[1], [0], [0], [1], [0, 0, 1, 1], [], []>} : vector<8x128xbf16>, vector<128x32xbf16>, vector<8x32xf32> -> vector<8x32xf32>
    %31 = arith.addf %9, %30 : vector<8x32xf32>
    %32 = vector.extract_strided_slice %8 {offsets = [0, 128], sizes = [8, 128], strides = [1, 1]} : vector<8x1536xbf16> to vector<8x128xbf16>
    %33 = vector.extract_strided_slice %8 {offsets = [0, 640], sizes = [8, 128], strides = [1, 1]} : vector<8x1536xbf16> to vector<8x128xbf16>
    %34 = vector.extract_strided_slice %8 {offsets = [0, 1152], sizes = [8, 128], strides = [1, 1]} : vector<8x1536xbf16> to vector<8x128xbf16>
    %cst_15 = arith.constant dense<0.000000e+00> : vector<8x8xf32>
    %35 = tpu.matmul %32, %33, %cst_15 {dimension_numbers = #tpu.dot_dimension_numbers<[1], [1], [0], [0], [0, 0, 1, 0], [], []>} : vector<8x128xbf16>, vector<8x128xbf16>, vector<8x8xf32> -> vector<8x8xf32>
    %cst_16 = arith.constant 0.353553385 : f32
    %36 = vector.broadcast %cst_16 : f32 to vector<8x8xf32>
    %37 = arith.mulf %35, %36 : vector<8x8xf32>
    %cst_17 = arith.constant dense<0xFF800000> : vector<8xf32>
    %38 = vector.multi_reduction <maximumf>, %37, %cst_17 [1] : vector<8x8xf32> to vector<8xf32>
    %39 = vector.shape_cast %38 : vector<8xf32> to vector<8x1xf32>
    %40 = vector.broadcast %39 : vector<8x1xf32> to vector<8x8xf32>
    %41 = arith.subf %37, %40 : vector<8x8xf32>
    %42 = math.exp %41 : vector<8x8xf32>
    %cst_18 = arith.constant dense<0.000000e+00> : vector<8xf32>
    %43 = vector.multi_reduction <add>, %42, %cst_18 [1] : vector<8x8xf32> to vector<8xf32>
    %44 = vector.shape_cast %43 : vector<8xf32> to vector<8x1xf32>
    %45 = tpu.reciprocal %44 {approx = true} : vector<8x1xf32> -> vector<8x1xf32>
    %46 = vector.broadcast %45 : vector<8x1xf32> to vector<8x8xf32>
    %47 = arith.mulf %42, %46 : vector<8x8xf32>
    %48 = arith.truncf %47 : vector<8x8xf32> to vector<8x8xbf16>
    %cst_19 = arith.constant dense<0.000000e+00> : vector<8x128xf32>
    %49 = tpu.matmul %48, %34, %cst_19 {dimension_numbers = #tpu.dot_dimension_numbers<[1], [0], [0], [1], [0, 0, 1, 1], [], []>} : vector<8x8xbf16>, vector<8x128xbf16>, vector<8x128xf32> -> vector<8x128xf32>
    %50 = arith.truncf %49 : vector<8x128xf32> to vector<8x128xbf16>
    %c128 = arith.constant 128 : index
    %c0_20 = arith.constant 0 : index
    %51 = vector.load %arg4[%c128, %c0_20] : memref<512x32xbf16, #tpu.memory_space<vmem>>, vector<128x32xbf16>
    %cst_21 = arith.constant dense<0.000000e+00> : vector<8x32xf32>
    %52 = tpu.matmul %50, %51, %cst_21 {dimension_numbers = #tpu.dot_dimension_numbers<[1], [0], [0], [1], [0, 0, 1, 1], [], []>} : vector<8x128xbf16>, vector<128x32xbf16>, vector<8x32xf32> -> vector<8x32xf32>
    %53 = arith.addf %31, %52 : vector<8x32xf32>
    %54 = vector.extract_strided_slice %8 {offsets = [0, 256], sizes = [8, 128], strides = [1, 1]} : vector<8x1536xbf16> to vector<8x128xbf16>
    %55 = vector.extract_strided_slice %8 {offsets = [0, 768], sizes = [8, 128], strides = [1, 1]} : vector<8x1536xbf16> to vector<8x128xbf16>
    %56 = vector.extract_strided_slice %8 {offsets = [0, 1280], sizes = [8, 128], strides = [1, 1]} : vector<8x1536xbf16> to vector<8x128xbf16>
    %cst_22 = arith.constant dense<0.000000e+00> : vector<8x8xf32>
    %57 = tpu.matmul %54, %55, %cst_22 {dimension_numbers = #tpu.dot_dimension_numbers<[1], [1], [0], [0], [0, 0, 1, 0], [], []>} : vector<8x128xbf16>, vector<8x128xbf16>, vector<8x8xf32> -> vector<8x8xf32>
    %cst_23 = arith.constant 0.353553385 : f32
    %58 = vector.broadcast %cst_23 : f32 to vector<8x8xf32>
    %59 = arith.mulf %57, %58 : vector<8x8xf32>
    %cst_24 = arith.constant dense<0xFF800000> : vector<8xf32>
    %60 = vector.multi_reduction <maximumf>, %59, %cst_24 [1] : vector<8x8xf32> to vector<8xf32>
    %61 = vector.shape_cast %60 : vector<8xf32> to vector<8x1xf32>
    %62 = vector.broadcast %61 : vector<8x1xf32> to vector<8x8xf32>
    %63 = arith.subf %59, %62 : vector<8x8xf32>
    %64 = math.exp %63 : vector<8x8xf32>
    %cst_25 = arith.constant dense<0.000000e+00> : vector<8xf32>
    %65 = vector.multi_reduction <add>, %64, %cst_25 [1] : vector<8x8xf32> to vector<8xf32>
    %66 = vector.shape_cast %65 : vector<8xf32> to vector<8x1xf32>
    %67 = tpu.reciprocal %66 {approx = true} : vector<8x1xf32> -> vector<8x1xf32>
    %68 = vector.broadcast %67 : vector<8x1xf32> to vector<8x8xf32>
    %69 = arith.mulf %64, %68 : vector<8x8xf32>
    %70 = arith.truncf %69 : vector<8x8xf32> to vector<8x8xbf16>
    %cst_26 = arith.constant dense<0.000000e+00> : vector<8x128xf32>
    %71 = tpu.matmul %70, %56, %cst_26 {dimension_numbers = #tpu.dot_dimension_numbers<[1], [0], [0], [1], [0, 0, 1, 1], [], []>} : vector<8x8xbf16>, vector<8x128xbf16>, vector<8x128xf32> -> vector<8x128xf32>
    %72 = arith.truncf %71 : vector<8x128xf32> to vector<8x128xbf16>
    %c256 = arith.constant 256 : index
    %c0_27 = arith.constant 0 : index
    %73 = vector.load %arg4[%c256, %c0_27] : memref<512x32xbf16, #tpu.memory_space<vmem>>, vector<128x32xbf16>
    %cst_28 = arith.constant dense<0.000000e+00> : vector<8x32xf32>
    %74 = tpu.matmul %72, %73, %cst_28 {dimension_numbers = #tpu.dot_dimension_numbers<[1], [0], [0], [1], [0, 0, 1, 1], [], []>} : vector<8x128xbf16>, vector<128x32xbf16>, vector<8x32xf32> -> vector<8x32xf32>
    %75 = arith.addf %53, %74 : vector<8x32xf32>
    %76 = vector.extract_strided_slice %8 {offsets = [0, 384], sizes = [8, 128], strides = [1, 1]} : vector<8x1536xbf16> to vector<8x128xbf16>
    %77 = vector.extract_strided_slice %8 {offsets = [0, 896], sizes = [8, 128], strides = [1, 1]} : vector<8x1536xbf16> to vector<8x128xbf16>
    %78 = vector.extract_strided_slice %8 {offsets = [0, 1408], sizes = [8, 128], strides = [1, 1]} : vector<8x1536xbf16> to vector<8x128xbf16>
    %cst_29 = arith.constant dense<0.000000e+00> : vector<8x8xf32>
    %79 = tpu.matmul %76, %77, %cst_29 {dimension_numbers = #tpu.dot_dimension_numbers<[1], [1], [0], [0], [0, 0, 1, 0], [], []>} : vector<8x128xbf16>, vector<8x128xbf16>, vector<8x8xf32> -> vector<8x8xf32>
    %cst_30 = arith.constant 0.353553385 : f32
    %80 = vector.broadcast %cst_30 : f32 to vector<8x8xf32>
    %81 = arith.mulf %79, %80 : vector<8x8xf32>
    %cst_31 = arith.constant dense<0xFF800000> : vector<8xf32>
    %82 = vector.multi_reduction <maximumf>, %81, %cst_31 [1] : vector<8x8xf32> to vector<8xf32>
    %83 = vector.shape_cast %82 : vector<8xf32> to vector<8x1xf32>
    %84 = vector.broadcast %83 : vector<8x1xf32> to vector<8x8xf32>
    %85 = arith.subf %81, %84 : vector<8x8xf32>
    %86 = math.exp %85 : vector<8x8xf32>
    %cst_32 = arith.constant dense<0.000000e+00> : vector<8xf32>
    %87 = vector.multi_reduction <add>, %86, %cst_32 [1] : vector<8x8xf32> to vector<8xf32>
    %88 = vector.shape_cast %87 : vector<8xf32> to vector<8x1xf32>
    %89 = tpu.reciprocal %88 {approx = true} : vector<8x1xf32> -> vector<8x1xf32>
    %90 = vector.broadcast %89 : vector<8x1xf32> to vector<8x8xf32>
    %91 = arith.mulf %86, %90 : vector<8x8xf32>
    %92 = arith.truncf %91 : vector<8x8xf32> to vector<8x8xbf16>
    %cst_33 = arith.constant dense<0.000000e+00> : vector<8x128xf32>
    %93 = tpu.matmul %92, %78, %cst_33 {dimension_numbers = #tpu.dot_dimension_numbers<[1], [0], [0], [1], [0, 0, 1, 1], [], []>} : vector<8x8xbf16>, vector<8x128xbf16>, vector<8x128xf32> -> vector<8x128xf32>
    %94 = arith.truncf %93 : vector<8x128xf32> to vector<8x128xbf16>
    %c384 = arith.constant 384 : index
    %c0_34 = arith.constant 0 : index
    %95 = vector.load %arg4[%c384, %c0_34] : memref<512x32xbf16, #tpu.memory_space<vmem>>, vector<128x32xbf16>
    %cst_35 = arith.constant dense<0.000000e+00> : vector<8x32xf32>
    %96 = tpu.matmul %94, %95, %cst_35 {dimension_numbers = #tpu.dot_dimension_numbers<[1], [0], [0], [1], [0, 0, 1, 1], [], []>} : vector<8x128xbf16>, vector<128x32xbf16>, vector<8x32xf32> -> vector<8x32xf32>
    %97 = arith.addf %75, %96 : vector<8x32xf32>
    %c0_36 = arith.constant 0 : index
    %c0_37 = arith.constant 0 : index
    %98 = vector.load %arg5[%c0_36, %c0_37] : memref<1x32xf32, #tpu.memory_space<vmem>>, vector<1x32xf32>
    %99 = vector.broadcast %98 : vector<1x32xf32> to vector<8x32xf32>
    %100 = arith.addf %97, %99 : vector<8x32xf32>
    %101 = arith.addf %1, %100 : vector<8x32xf32>
    %cst_38 = arith.constant dense<0.000000e+00> : vector<8xf32>
    %102 = vector.multi_reduction <add>, %101, %cst_38 [1] : vector<8x32xf32> to vector<8xf32>
    %103 = vector.shape_cast %102 : vector<8xf32> to vector<8x1xf32>
    %cst_39 = arith.constant 3.200000e+01 : f32
    %104 = vector.broadcast %cst_39 : f32 to vector<8x1xf32>
    %105 = arith.divf %103, %104 : vector<8x1xf32>
    %106 = arith.mulf %101, %101 : vector<8x32xf32>
    %cst_40 = arith.constant dense<0.000000e+00> : vector<8xf32>
    %107 = vector.multi_reduction <add>, %106, %cst_40 [1] : vector<8x32xf32> to vector<8xf32>
    %108 = vector.shape_cast %107 : vector<8xf32> to vector<8x1xf32>
    %cst_41 = arith.constant 3.200000e+01 : f32
    %109 = vector.broadcast %cst_41 : f32 to vector<8x1xf32>
    %110 = arith.divf %108, %109 : vector<8x1xf32>
    %111 = arith.mulf %105, %105 : vector<8x1xf32>
    %112 = arith.subf %110, %111 : vector<8x1xf32>
    %113 = vector.broadcast %105 : vector<8x1xf32> to vector<8x32xf32>
    %114 = arith.subf %101, %113 : vector<8x32xf32>
    %cst_42 = arith.constant 9.99999974E-6 : f32
    %115 = vector.broadcast %cst_42 : f32 to vector<8x1xf32>
    %116 = arith.addf %112, %115 : vector<8x1xf32>
    %117 = math.rsqrt %116 : vector<8x1xf32>
    %118 = vector.broadcast %117 : vector<8x1xf32> to vector<8x32xf32>
    %119 = arith.mulf %114, %118 : vector<8x32xf32>
    %c0_43 = arith.constant 0 : index
    %c0_44 = arith.constant 0 : index
    %120 = vector.load %arg6[%c0_43, %c0_44] : memref<1x32xf32, #tpu.memory_space<vmem>>, vector<1x32xf32>
    %121 = vector.broadcast %120 : vector<1x32xf32> to vector<8x32xf32>
    %122 = arith.mulf %119, %121 : vector<8x32xf32>
    %c0_45 = arith.constant 0 : index
    %c0_46 = arith.constant 0 : index
    %123 = vector.load %arg7[%c0_45, %c0_46] : memref<1x32xf32, #tpu.memory_space<vmem>>, vector<1x32xf32>
    %124 = vector.broadcast %123 : vector<1x32xf32> to vector<8x32xf32>
    %125 = arith.addf %122, %124 : vector<8x32xf32>
    %126 = arith.truncf %125 : vector<8x32xf32> to vector<8x32xbf16>
    %c0_47 = arith.constant 0 : index
    %c0_48 = arith.constant 0 : index
    %127 = vector.load %arg8[%c0_47, %c0_48] : memref<32x64xbf16, #tpu.memory_space<vmem>>, vector<32x64xbf16>
    %cst_49 = arith.constant dense<0.000000e+00> : vector<8x64xf32>
    %128 = tpu.matmul %126, %127, %cst_49 {dimension_numbers = #tpu.dot_dimension_numbers<[1], [0], [0], [1], [0, 0, 1, 1], [], []>} : vector<8x32xbf16>, vector<32x64xbf16>, vector<8x64xf32> -> vector<8x64xf32>
    %c0_50 = arith.constant 0 : index
    %c0_51 = arith.constant 0 : index
    %129 = vector.load %arg9[%c0_50, %c0_51] : memref<1x64xf32, #tpu.memory_space<vmem>>, vector<1x64xf32>
    %130 = vector.broadcast %129 : vector<1x64xf32> to vector<8x64xf32>
    %131 = arith.addf %128, %130 : vector<8x64xf32>
    %cst_52 = arith.constant 0.000000e+00 : f32
    %132 = vector.broadcast %cst_52 : f32 to vector<8x64xf32>
    %133 = arith.maximumf %131, %132 : vector<8x64xf32>
    %134 = arith.truncf %133 : vector<8x64xf32> to vector<8x64xbf16>
    %c0_53 = arith.constant 0 : index
    %c0_54 = arith.constant 0 : index
    %135 = vector.load %arg10[%c0_53, %c0_54] : memref<64x32xbf16, #tpu.memory_space<vmem>>, vector<64x32xbf16>
    %cst_55 = arith.constant dense<0.000000e+00> : vector<8x32xf32>
    %136 = tpu.matmul %134, %135, %cst_55 {dimension_numbers = #tpu.dot_dimension_numbers<[1], [0], [0], [1], [0, 0, 1, 1], [], []>} : vector<8x64xbf16>, vector<64x32xbf16>, vector<8x32xf32> -> vector<8x32xf32>
    %c0_56 = arith.constant 0 : index
    %c0_57 = arith.constant 0 : index
    %137 = vector.load %arg11[%c0_56, %c0_57] : memref<1x32xf32, #tpu.memory_space<vmem>>, vector<1x32xf32>
    %138 = vector.broadcast %137 : vector<1x32xf32> to vector<8x32xf32>
    %139 = arith.addf %136, %138 : vector<8x32xf32>
    %140 = arith.addf %125, %139 : vector<8x32xf32>
    %cst_58 = arith.constant dense<0.000000e+00> : vector<8xf32>
    %141 = vector.multi_reduction <add>, %140, %cst_58 [1] : vector<8x32xf32> to vector<8xf32>
    %142 = vector.shape_cast %141 : vector<8xf32> to vector<8x1xf32>
    %cst_59 = arith.constant 3.200000e+01 : f32
    %143 = vector.broadcast %cst_59 : f32 to vector<8x1xf32>
    %144 = arith.divf %142, %143 : vector<8x1xf32>
    %145 = arith.mulf %140, %140 : vector<8x32xf32>
    %cst_60 = arith.constant dense<0.000000e+00> : vector<8xf32>
    %146 = vector.multi_reduction <add>, %145, %cst_60 [1] : vector<8x32xf32> to vector<8xf32>
    %147 = vector.shape_cast %146 : vector<8xf32> to vector<8x1xf32>
    %cst_61 = arith.constant 3.200000e+01 : f32
    %148 = vector.broadcast %cst_61 : f32 to vector<8x1xf32>
    %149 = arith.divf %147, %148 : vector<8x1xf32>
    %150 = arith.mulf %144, %144 : vector<8x1xf32>
    %151 = arith.subf %149, %150 : vector<8x1xf32>
    %152 = vector.broadcast %144 : vector<8x1xf32> to vector<8x32xf32>
    %153 = arith.subf %140, %152 : vector<8x32xf32>
    %cst_62 = arith.constant 9.99999974E-6 : f32
    %154 = vector.broadcast %cst_62 : f32 to vector<8x1xf32>
    %155 = arith.addf %151, %154 : vector<8x1xf32>
    %156 = math.rsqrt %155 : vector<8x1xf32>
    %157 = vector.broadcast %156 : vector<8x1xf32> to vector<8x32xf32>
    %158 = arith.mulf %153, %157 : vector<8x32xf32>
    %c0_63 = arith.constant 0 : index
    %c0_64 = arith.constant 0 : index
    %159 = vector.load %arg12[%c0_63, %c0_64] : memref<1x32xf32, #tpu.memory_space<vmem>>, vector<1x32xf32>
    %160 = vector.broadcast %159 : vector<1x32xf32> to vector<8x32xf32>
    %161 = arith.mulf %158, %160 : vector<8x32xf32>
    %c0_65 = arith.constant 0 : index
    %c0_66 = arith.constant 0 : index
    %162 = vector.load %arg13[%c0_65, %c0_66] : memref<1x32xf32, #tpu.memory_space<vmem>>, vector<1x32xf32>
    %163 = vector.broadcast %162 : vector<1x32xf32> to vector<8x32xf32>
    %164 = arith.addf %161, %163 : vector<8x32xf32>
    %c0_67 = arith.constant 0 : index
    %c0_68 = arith.constant 0 : index
    %c0_69 = arith.constant 0 : index
    %165 = vector.load %arg14[%c0_67, %c0_68, %c0_69] : memref<1x8x32xf32, #tpu.memory_space<vmem>>, vector<1x8x32xf32>
    %166 = vector.shape_cast %165 : vector<1x8x32xf32> to vector<8x32xf32>
    %167 = vector.shape_cast %164 : vector<8x32xf32> to vector<1x8x32xf32>
    tpu.vector_store %arg14[%c0_67, %c0_68, %c0_69], %167 {strides = array<i32>} : memref<1x8x32xf32, #tpu.memory_space<vmem>>, vector<1x8x32xf32>,
    return
  }
  func.func @transform_0(%arg0: i32) -> (i32, i32, i32) {
    %c0_i32 = arith.constant 0 : i32
    %c0_i32_0 = arith.constant 0 : i32
    %c0_i32_1 = arith.constant 0 : i32
    return %arg0, %c0_i32, %c0_i32_0 : i32, i32, i32
  }
  func.func @transform_1(%arg0: i32) -> (i32, i32) {
    %c0_i32 = arith.constant 0 : i32
    %c0_i32_0 = arith.constant 0 : i32
    %c0_i32_1 = arith.constant 0 : i32
    return %c0_i32, %c0_i32_0 : i32, i32
  }
  func.func @transform_2(%arg0: i32) -> (i32, i32) {
    %c0_i32 = arith.constant 0 : i32
    %c0_i32_0 = arith.constant 0 : i32
    %c0_i32_1 = arith.constant 0 : i32
    return %c0_i32, %c0_i32_0 : i32, i32
  }
  func.func @transform_3(%arg0: i32) -> (i32, i32) {
    %c0_i32 = arith.constant 0 : i32
    %c0_i32_0 = arith.constant 0 : i32
    %c0_i32_1 = arith.constant 0 : i32
    return %c0_i32, %c0_i32_0 : i32, i32
  }
  func.func @transform_4(%arg0: i32) -> (i32, i32) {
    %c0_i32 = arith.constant 0 : i32
    %c0_i32_0 = arith.constant 0 : i32
    %c0_i32_1 = arith.constant 0 : i32
    return %c0_i32, %c0_i32_0 : i32, i32
  }
  func.func @transform_5(%arg0: i32) -> (i32, i32) {
    %c0_i32 = arith.constant 0 : i32
    %c0_i32_0 = arith.constant 0 : i32
    %c0_i32_1 = arith.constant 0 : i32
    return %c0_i32, %c0_i32_0 : i32, i32
  }
  func.func @transform_6(%arg0: i32) -> (i32, i32) {
    %c0_i32 = arith.constant 0 : i32
    %c0_i32_0 = arith.constant 0 : i32
    %c0_i32_1 = arith.constant 0 : i32
    return %c0_i32, %c0_i32_0 : i32, i32
  }
  func.func @transform_7(%arg0: i32) -> (i32, i32) {
    %c0_i32 = arith.constant 0 : i32
    %c0_i32_0 = arith.constant 0 : i32
    %c0_i32_1 = arith.constant 0 : i32
    return %c0_i32, %c0_i32_0 : i32, i32
  }
  func.func @transform_8(%arg0: i32) -> (i32, i32) {
    %c0_i32 = arith.constant 0 : i32
    %c0_i32_0 = arith.constant 0 : i32
    %c0_i32_1 = arith.constant 0 : i32
    return %c0_i32, %c0_i32_0 : i32, i32
  }
  func.func @transform_9(%arg0: i32) -> (i32, i32) {
    %c0_i32 = arith.constant 0 : i32
    %c0_i32_0 = arith.constant 0 : i32
    %c0_i32_1 = arith.constant 0 : i32
    return %c0_i32, %c0_i32_0 : i32, i32
  }
  func.func @transform_10(%arg0: i32) -> (i32, i32) {
    %c0_i32 = arith.constant 0 : i32
    %c0_i32_0 = arith.constant 0 : i32
    %c0_i32_1 = arith.constant 0 : i32
    return %c0_i32, %c0_i32_0 : i32, i32
  }
  func.func @transform_11(%arg0: i32) -> (i32, i32) {
    %c0_i32 = arith.constant 0 : i32
    %c0_i32_0 = arith.constant 0 : i32
    %c0_i32_1 = arith.constant 0 : i32
    return %c0_i32, %c0_i32_0 : i32, i32
  }
  func.func @transform_12(%arg0: i32) -> (i32, i32) {
    %c0_i32 = arith.constant 0 : i32
    %c0_i32_0 = arith.constant 0 : i32
    %c0_i32_1 = arith.constant 0 : i32
    return %c0_i32, %c0_i32_0 : i32, i32
  }
  func.func @transform_13(%arg0: i32) -> (i32, i32, i32) {
    %c0_i32 = arith.constant 0 : i32
    %c0_i32_0 = arith.constant 0 : i32
    %c0_i32_1 = arith.constant 0 : i32
    return %arg0, %c0_i32, %c0_i32_0 : i32, i32, i32
  }
}

</mosaic_0001>

<llo_original>
// kernel: encoder_layer_forward.1
$region0: #{encoder_layer_forward.1}
  #allocation0 [shape = 'u32[]', space=smem, size = 0x4, offset = 0x4, fixed_abs, tag = 'smem constant byte address 0x4 - core index']
  #allocation1 [shape = 'u32[144,128]{1,0:T(1,128)}', space=vmem, size = 0x12000, scoped, tag = 'internal scratch']
  %s0 = inlined_call_operand.vmem [shape: f32[2,8,32], index: 0, kind: input, shape index: {}]
  %s1 = inlined_call_operand.vmem [shape: bf16[32,1536], index: 1, kind: input, shape index: {}]
  %s2 = inlined_call_operand.vmem [shape: f32[1,1536], index: 2, kind: input, shape index: {}]
  %s3 = inlined_call_operand.vmem [shape: bf16[512,32], index: 3, kind: input, shape index: {}]
  %s4 = inlined_call_operand.vmem [shape: f32[1,32], index: 4, kind: input, shape index: {}]
  %s5 = inlined_call_operand.vmem [shape: f32[1,32], index: 5, kind: input, shape index: {}]
  %s6 = inlined_call_operand.vmem [shape: f32[1,32], index: 6, kind: input, shape index: {}]
  %s7 = inlined_call_operand.vmem [shape: bf16[32,64], index: 7, kind: input, shape index: {}]
  %s8 = inlined_call_operand.vmem [shape: f32[1,64], index: 8, kind: input, shape index: {}]
  %s9 = inlined_call_operand.vmem [shape: bf16[64,32], index: 9, kind: input, shape index: {}]
  %s10 = inlined_call_operand.vmem [shape: f32[1,32], index: 10, kind: input, shape index: {}]
  %s11 = inlined_call_operand.vmem [shape: f32[1,32], index: 11, kind: input, shape index: {}]
  %s12 = inlined_call_operand.vmem [shape: f32[1,32], index: 12, kind: input, shape index: {}]
  %s13 = inlined_call_operand.hbm [shape: f32[2,8,32], index: 13, kind: output, shape index: {}]
  %s14 = sld [smem:[#allocation0]]
  $region85: #{encoder_layer_forward.1} parent=0
    _
  %s16 = ssub.s32 1, %s14
  %s17 = scalar_select 0, %s16, %s14
  $region1: #{encoder_layer_forward.1} parent=0
    #allocation2 [shape = 'u8[8192]{0}', space=vmem, size = 0x2000, scoped, tag = 'output window, operand 0']
    #allocation3 [shape = 's32[2]{0}', space=sflag, size = 0x8, scoped, tag = 'scoped memory for encoder_layer_forward.1']
    %18 = vsyncpa [#allocation3], 0
    %s19 = scalar_lea.sflag [#allocation3], 1
    %20 = vsyncpa %s19, 0
    loop: start=0, step=1, limit=4
    $region2: #{encoder_layer_forward.1} parent=1 // loop_pre_header
      _
    $region3: #{encoder_layer_forward.1} parent=1 // loop_header
      %s22 = sphi 0, %s26
      %p23 = scmp.ge.s32.totalorder %s22, 4
      %s32 = sphi 0, %s34
      %s35 = sphi 0, %s32
      %s36 = sphi 0, %s35
      %s52 = sphi 0, %s36
      %s56 = sphi 0, %s56
      %s58 = sphi 0, %s56
      %s59 = sphi 0, %s58
      %s73 = sphi 0, %s59
      %s77 = sphi 0, %s77
      %s79 = sphi 0, %s77
      %s80 = sphi 0, %s79
      %s94 = sphi 0, %s80
      %s98 = sphi 0, %s98
      %s100 = sphi 0, %s98
      %s101 = sphi 0, %s100
      %s115 = sphi 0, %s101
      %s119 = sphi 0, %s119
      %s121 = sphi 0, %s119
      %s122 = sphi 0, %s121
      %s136 = sphi 0, %s122
      %s140 = sphi 0, %s140
      %s142 = sphi 0, %s140
      %s143 = sphi 0, %s142
      %s157 = sphi 0, %s143
      %s161 = sphi 0, %s161
      %s163 = sphi 0, %s161
      %s164 = sphi 0, %s163
      %s178 = sphi 0, %s164
      %s182 = sphi 0, %s182
      %s184 = sphi 0, %s182
      %s185 = sphi 0, %s184
      %s199 = sphi 0, %s185
      %s203 = sphi 0, %s203
      %s205 = sphi 0, %s203
      %s206 = sphi 0, %s205
      %s220 = sphi 0, %s206
      %s224 = sphi 0, %s224
      %s226 = sphi 0, %s224
      %s227 = sphi 0, %s226
      %s241 = sphi 0, %s227
      %s245 = sphi 0, %s245
      %s247 = sphi 0, %s245
      %s248 = sphi 0, %s247
      %s262 = sphi 0, %s248
      %s266 = sphi 0, %s266
      %s268 = sphi 0, %s266
      %s269 = sphi 0, %s268
      %s283 = sphi 0, %s269
      %s287 = sphi 0, %s287
      %s289 = sphi 0, %s287
      %s290 = sphi 0, %s289
      %s304 = sphi 0, %s290
      %s310 = sphi 0, %s312
      %s313 = sphi 0, %s310
      %s314 = sphi 0, %s313
      %s330 = sphi 0, %s314
    $region4: #{encoder_layer_forward.1} parent=1 // loop_header_branch
      %25 = sbr.rel (%p23) target = $region8
    $region5: #{encoder_layer_forward.1} parent=1 // loop_body
      %s27 = ssub.s32 %s22, 1
      %s28 = ssub.s32 %s22, 2
      %s29 = sadd.s32 %s22, 1
      %s30 = ssub.s32 %s22, %s29
      %p31 = scmp.eq.s32.totalorder %s30, 0
      %s33 = sadd.s32 %s32, 1
      %s34 = scalar_select %p31, %s32, %s33
      %p37 = pneg %p31
      %p38 = scmp.eq.s32.totalorder %s22, 1
      %p39 = por %p37, %p38
      %p40 = scmp.ne.s32.totalorder %s32, %s35
      %p41 = scmp.eq.s32.totalorder %s22, 0
      %p42 = por %p40, %p41
      %p43 = scmp.ne.s32.totalorder %s32, %s35
      %p44 = scmp.eq.s32.totalorder %s27, 1
      %p45 = por %p43, %p44
      %p46 = scmp.ne.s32.totalorder %s35, %s36
      %p47 = scmp.eq.s32.totalorder %s27, 0
      %p48 = por %p46, %p47
      %p49 = scmp.ne.s32.totalorder %s35, %s36
      %p50 = scmp.eq.s32.totalorder %s28, 1
      %p51 = por %p49, %p50
      %p53 = scmp.ne.s32.totalorder %s36, %s52
      %p54 = scmp.eq.s32.totalorder %s28, 0
      %p55 = por %p53, %p54
      %s57 = sadd.s32 %s56, 1
      %p60 = scmp.eq.s32.totalorder %s22, 1
      %p61 = scmp.ne.s32.totalorder %s56, %s58
      %p62 = scmp.eq.s32.totalorder %s22, 0
      %p63 = por %p61, %p62
      %p64 = scmp.ne.s32.totalorder %s56, %s58
      %p65 = scmp.eq.s32.totalorder %s27, 1
      %p66 = por %p64, %p65
      %p67 = scmp.ne.s32.totalorder %s58, %s59
      %p68 = scmp.eq.s32.totalorder %s27, 0
      %p69 = por %p67, %p68
      %p70 = scmp.ne.s32.totalorder %s58, %s59
      %p71 = scmp.eq.s32.totalorder %s28, 1
      %p72 = por %p70, %p71
      %p74 = scmp.ne.s32.totalorder %s59, %s73
      %p75 = scmp.eq.s32.totalorder %s28, 0
      %p76 = por %p74, %p75
      %s78 = sadd.s32 %s77, 1
      %p81 = scmp.eq.s32.totalorder %s22, 1
      %p82 = scmp.ne.s32.totalorder %s77, %s79
      %p83 = scmp.eq.s32.totalorder %s22, 0
      %p84 = por %p82, %p83
      %p85 = scmp.ne.s32.totalorder %s77, %s79
      %p86 = scmp.eq.s32.totalorder %s27, 1
      %p87 = por %p85, %p86
      %p88 = scmp.ne.s32.totalorder %s79, %s80
      %p89 = scmp.eq.s32.totalorder %s27, 0
      %p90 = por %p88, %p89
      %p91 = scmp.ne.s32.totalorder %s79, %s80
      %p92 = scmp.eq.s32.totalorder %s28, 1
      %p93 = por %p91, %p92
      %p95 = scmp.ne.s32.totalorder %s80, %s94
      %p96 = scmp.eq.s32.totalorder %s28, 0
      %p97 = por %p95, %p96
      %s99 = sadd.s32 %s98, 1
      %p102 = scmp.eq.s32.totalorder %s22, 1
      %p103 = scmp.ne.s32.totalorder %s98, %s100
      %p104 = scmp.eq.s32.totalorder %s22, 0
      %p105 = por %p103, %p104
      %p106 = scmp.ne.s32.totalorder %s98, %s100
      %p107 = scmp.eq.s32.totalorder %s27, 1
      %p108 = por %p106, %p107
      %p109 = scmp.ne.s32.totalorder %s100, %s101
      %p110 = scmp.eq.s32.totalorder %s27, 0
      %p111 = por %p109, %p110
      %p112 = scmp.ne.s32.totalorder %s100, %s101
      %p113 = scmp.eq.s32.totalorder %s28, 1
      %p114 = por %p112, %p113
      %p116 = scmp.ne.s32.totalorder %s101, %s115
      %p117 = scmp.eq.s32.totalorder %s28, 0
      %p118 = por %p116, %p117
      %s120 = sadd.s32 %s119, 1
      %p123 = scmp.eq.s32.totalorder %s22, 1
      %p124 = scmp.ne.s32.totalorder %s119, %s121
      %p125 = scmp.eq.s32.totalorder %s22, 0
      %p126 = por %p124, %p125
      %p127 = scmp.ne.s32.totalorder %s119, %s121
      %p128 = scmp.eq.s32.totalorder %s27, 1
      %p129 = por %p127, %p128
      %p130 = scmp.ne.s32.totalorder %s121, %s122
      %p131 = scmp.eq.s32.totalorder %s27, 0
      %p132 = por %p130, %p131
      %p133 = scmp.ne.s32.totalorder %s121, %s122
      %p134 = scmp.eq.s32.totalorder %s28, 1
      %p135 = por %p133, %p134
      %p137 = scmp.ne.s32.totalorder %s122, %s136
      %p138 = scmp.eq.s32.totalorder %s28, 0
      %p139 = por %p137, %p138
      %s141 = sadd.s32 %s140, 1
      %p144 = scmp.eq.s32.totalorder %s22, 1
      %p145 = scmp.ne.s32.totalorder %s140, %s142
      %p146 = scmp.eq.s32.totalorder %s22, 0
      %p147 = por %p145, %p146
      %p148 = scmp.ne.s32.totalorder %s140, %s142
      %p149 = scmp.eq.s32.totalorder %s27, 1
      %p150 = por %p148, %p149
      %p151 = scmp.ne.s32.totalorder %s142, %s143
      %p152 = scmp.eq.s32.totalorder %s27, 0
      %p153 = por %p151, %p152
      %p154 = scmp.ne.s32.totalorder %s142, %s143
      %p155 = scmp.eq.s32.totalorder %s28, 1
      %p156 = por %p154, %p155
      %p158 = scmp.ne.s32.totalorder %s143, %s157
      %p159 = scmp.eq.s32.totalorder %s28, 0
      %p160 = por %p158, %p159
      %s162 = sadd.s32 %s161, 1
      %p165 = scmp.eq.s32.totalorder %s22, 1
      %p166 = scmp.ne.s32.totalorder %s161, %s163
      %p167 = scmp.eq.s32.totalorder %s22, 0
      %p168 = por %p166, %p167
      %p169 = scmp.ne.s32.totalorder %s161, %s163
      %p170 = scmp.eq.s32.totalorder %s27, 1
      %p171 = por %p169, %p170
      %p172 = scmp.ne.s32.totalorder %s163, %s164
      %p173 = scmp.eq.s32.totalorder %s27, 0
      %p174 = por %p172, %p173
      %p175 = scmp.ne.s32.totalorder %s163, %s164
      %p176 = scmp.eq.s32.totalorder %s28, 1
      %p177 = por %p175, %p176
      %p179 = scmp.ne.s32.totalorder %s164, %s178
      %p180 = scmp.eq.s32.totalorder %s28, 0
      %p181 = por %p179, %p180
      %s183 = sadd.s32 %s182, 1
      %p186 = scmp.eq.s32.totalorder %s22, 1
      %p187 = scmp.ne.s32.totalorder %s182, %s184
      %p188 = scmp.eq.s32.totalorder %s22, 0
      %p189 = por %p187, %p188
      %p190 = scmp.ne.s32.totalorder %s182, %s184
      %p191 = scmp.eq.s32.totalorder %s27, 1
      %p192 = por %p190, %p191
      %p193 = scmp.ne.s32.totalorder %s184, %s185
      %p194 = scmp.eq.s32.totalorder %s27, 0
      %p195 = por %p193, %p194
      %p196 = scmp.ne.s32.totalorder %s184, %s185
      %p197 = scmp.eq.s32.totalorder %s28, 1
      %p198 = por %p196, %p197
      %p200 = scmp.ne.s32.totalorder %s185, %s199
      %p201 = scmp.eq.s32.totalorder %s28, 0
      %p202 = por %p200, %p201
      %s204 = sadd.s32 %s203, 1
      %p207 = scmp.eq.s32.totalorder %s22, 1
      %p208 = scmp.ne.s32.totalorder %s203, %s205
      %p209 = scmp.eq.s32.totalorder %s22, 0
      %p210 = por %p208, %p209
      %p211 = scmp.ne.s32.totalorder %s203, %s205
      %p212 = scmp.eq.s32.totalorder %s27, 1
      %p213 = por %p211, %p212
      %p214 = scmp.ne.s32.totalorder %s205, %s206
      %p215 = scmp.eq.s32.totalorder %s27, 0
      %p216 = por %p214, %p215
      %p217 = scmp.ne.s32.totalorder %s205, %s206
      %p218 = scmp.eq.s32.totalorder %s28, 1
      %p219 = por %p217, %p218
      %p221 = scmp.ne.s32.totalorder %s206, %s220
      %p222 = scmp.eq.s32.totalorder %s28, 0
      %p223 = por %p221, %p222
      %s225 = sadd.s32 %s224, 1
      %p228 = scmp.eq.s32.totalorder %s22, 1
      %p229 = scmp.ne.s32.totalorder %s224, %s226
      %p230 = scmp.eq.s32.totalorder %s22, 0
      %p231 = por %p229, %p230
      %p232 = scmp.ne.s32.totalorder %s224, %s226
      %p233 = scmp.eq.s32.totalorder %s27, 1
      %p234 = por %p232, %p233
      %p235 = scmp.ne.s32.totalorder %s226, %s227
      %p236 = scmp.eq.s32.totalorder %s27, 0
      %p237 = por %p235, %p236
      %p238 = scmp.ne.s32.totalorder %s226, %s227
      %p239 = scmp.eq.s32.totalorder %s28, 1
      %p240 = por %p238, %p239
      %p242 = scmp.ne.s32.totalorder %s227, %s241
      %p243 = scmp.eq.s32.totalorder %s28, 0
      %p244 = por %p242, %p243
      %s246 = sadd.s32 %s245, 1
      %p249 = scmp.eq.s32.totalorder %s22, 1
      %p250 = scmp.ne.s32.totalorder %s245, %s247
      %p251 = scmp.eq.s32.totalorder %s22, 0
      %p252 = por %p250, %p251
      %p253 = scmp.ne.s32.totalorder %s245, %s247
      %p254 = scmp.eq.s32.totalorder %s27, 1
      %p255 = por %p253, %p254
      %p256 = scmp.ne.s32.totalorder %s247, %s248
      %p257 = scmp.eq.s32.totalorder %s27, 0
      %p258 = por %p256, %p257
      %p259 = scmp.ne.s32.totalorder %s247, %s248
      %p260 = scmp.eq.s32.totalorder %s28, 1
      %p261 = por %p259, %p260
      %p263 = scmp.ne.s32.totalorder %s248, %s262
      %p264 = scmp.eq.s32.totalorder %s28, 0
      %p265 = por %p263, %p264
      %s267 = sadd.s32 %s266, 1
      %p270 = scmp.eq.s32.totalorder %s22, 1
      %p271 = scmp.ne.s32.totalorder %s266, %s268
      %p272 = scmp.eq.s32.totalorder %s22, 0
      %p273 = por %p271, %p272
      %p274 = scmp.ne.s32.totalorder %s266, %s268
      %p275 = scmp.eq.s32.totalorder %s27, 1
      %p276 = por %p274, %p275
      %p277 = scmp.ne.s32.totalorder %s268, %s269
      %p278 = scmp.eq.s32.totalorder %s27, 0
      %p279 = por %p277, %p278
      %p280 = scmp.ne.s32.totalorder %s268, %s269
      %p281 = scmp.eq.s32.totalorder %s28, 1
      %p282 = por %p280, %p281
      %p284 = scmp.ne.s32.totalorder %s269, %s283
      %p285 = scmp.eq.s32.totalorder %s28, 0
      %p286 = por %p284, %p285
      %s288 = sadd.s32 %s287, 1
      %p291 = scmp.eq.s32.totalorder %s22, 1
      %p292 = scmp.ne.s32.totalorder %s287, %s289
      %p293 = scmp.eq.s32.totalorder %s22, 0
      %p294 = por %p292, %p293
      %p295 = scmp.ne.s32.totalorder %s287, %s289
      %p296 = scmp.eq.s32.totalorder %s27, 1
      %p297 = por %p295, %p296
      %p298 = scmp.ne.s32.totalorder %s289, %s290
      %p299 = scmp.eq.s32.totalorder %s27, 0
      %p300 = por %p298, %p299
      %p301 = scmp.ne.s32.totalorder %s289, %s290
      %p302 = scmp.eq.s32.totalorder %s28, 1
      %p303 = por %p301, %p302
      %p305 = scmp.ne.s32.totalorder %s290, %s304
      %p306 = scmp.eq.s32.totalorder %s28, 0
      %p307 = por %p305, %p306
      %s308 = ssub.s32 %s22, %s29
      %p309 = scmp.eq.s32.totalorder %s308, 0
      %s311 = sadd.s32 %s310, 1
      %s312 = scalar_select %p309, %s310, %s311
      %p315 = pneg %p309
      %p316 = scmp.eq.s32.totalorder %s22, 1
      %p317 = por %p315, %p316
      %p318 = scmp.ne.s32.totalorder %s310, %s313
      %p319 = scmp.eq.s32.totalorder %s22, 0
      %p320 = por %p318, %p319
      %p321 = scmp.ne.s32.totalorder %s310, %s313
      %p322 = scmp.eq.s32.totalorder %s27, 1
      %p323 = por %p321, %p322
      %p324 = scmp.ne.s32.totalorder %s313, %s314
      %p325 = scmp.eq.s32.totalorder %s27, 0
      %p326 = por %p324, %p325
      %p327 = scmp.ne.s32.totalorder %s313, %s314
      %p328 = scmp.eq.s32.totalorder %s28, 1
      %p329 = por %p327, %p328
      %p331 = scmp.ne.s32.totalorder %s314, %s330
      %p332 = scmp.eq.s32.totalorder %s28, 0
      %p333 = por %p331, %p332
      %p334 = scmp.le.s32.totalorder 1, %s22
      %p335 = scmp.lt.s32.totalorder %s22, 3
      %p336 = pnand %p334, %p335
      %p337 = pneg %p336
      // Predicated region
      $region9: #{encoder_layer_forward.1} parent=5 // pred_check
        _
      $region10: #{encoder_layer_forward.1} parent=5 // pred_check_branch
        %339 = sbr.rel (%p336) target = $region12
      $region11: #{encoder_layer_forward.1} parent=5 // pred_region
        %s340 = ssub.s32 %s22, 1
        // Predicated region
        $region13: #{encoder_layer_forward.1} parent=11 // pred_check
          %p341 = pneg %p69
        $region14: #{encoder_layer_forward.1} parent=11 // pred_check_branch
          %343 = sbr.rel (%p341) target = $region16
        $region15: #{encoder_layer_forward.1} parent=11 // pred_region
          _
        $region16: #{encoder_layer_forward.1} parent=11 // pred_fallthru
          _
        // Predicated region
        $region17: #{encoder_layer_forward.1} parent=11 // pred_check
          %p344 = pneg %p90
        $region18: #{encoder_layer_forward.1} parent=11 // pred_check_branch
          %346 = sbr.rel (%p344) target = $region20
        $region19: #{encoder_layer_forward.1} parent=11 // pred_region
          _
        $region20: #{encoder_layer_forward.1} parent=11 // pred_fallthru
          _
        // Predicated region
        $region21: #{encoder_layer_forward.1} parent=11 // pred_check
          %p347 = pneg %p111
        $region22: #{encoder_layer_forward.1} parent=11 // pred_check_branch
          %349 = sbr.rel (%p347) target = $region24
        $region23: #{encoder_layer_forward.1} parent=11 // pred_region
          _
        $region24: #{encoder_layer_forward.1} parent=11 // pred_fallthru
          _
        // Predicated region
        $region25: #{encoder_layer_forward.1} parent=11 // pred_check
          %p350 = pneg %p132
        $region26: #{encoder_layer_forward.1} parent=11 // pred_check_branch
          %352 = sbr.rel (%p350) target = $region28
        $region27: #{encoder_layer_forward.1} parent=11 // pred_region
          _
        $region28: #{encoder_layer_forward.1} parent=11 // pred_fallthru
          _
        // Predicated region
        $region29: #{encoder_layer_forward.1} parent=11 // pred_check
          %p353 = pneg %p153
        $region30: #{encoder_layer_forward.1} parent=11 // pred_check_branch
          %355 = sbr.rel (%p353) target = $region32
        $region31: #{encoder_layer_forward.1} parent=11 // pred_region
          _
        $region32: #{encoder_layer_forward.1} parent=11 // pred_fallthru
          _
        // Predicated region
        $region33: #{encoder_layer_forward.1} parent=11 // pred_check
          %p356 = pneg %p174
        $region34: #{encoder_layer_forward.1} parent=11 // pred_check_branch
          %358 = sbr.rel (%p356) target = $region36
        $region35: #{encoder_layer_forward.1} parent=11 // pred_region
          _
        $region36: #{encoder_layer_forward.1} parent=11 // pred_fallthru
          _
        // Predicated region
        $region37: #{encoder_layer_forward.1} parent=11 // pred_check
          %p359 = pneg %p195
        $region38: #{encoder_layer_forward.1} parent=11 // pred_check_branch
          %361 = sbr.rel (%p359) target = $region40
        $region39: #{encoder_layer_forward.1} parent=11 // pred_region
          _
        $region40: #{encoder_layer_forward.1} parent=11 // pred_fallthru
          _
        // Predicated region
        $region41: #{encoder_layer_forward.1} parent=11 // pred_check
          %p362 = pneg %p216
        $region42: #{encoder_layer_forward.1} parent=11 // pred_check_branch
          %364 = sbr.rel (%p362) target = $region44
        $region43: #{encoder_layer_forward.1} parent=11 // pred_region
          _
        $region44: #{encoder_layer_forward.1} parent=11 // pred_fallthru
          _
        // Predicated region
        $region45: #{encoder_layer_forward.1} parent=11 // pred_check
          %p365 = pneg %p237
        $region46: #{encoder_layer_forward.1} parent=11 // pred_check_branch
          %367 = sbr.rel (%p365) target = $region48
        $region47: #{encoder_layer_forward.1} parent=11 // pred_region
          _
        $region48: #{encoder_layer_forward.1} parent=11 // pred_fallthru
          _
        // Predicated region
        $region49: #{encoder_layer_forward.1} parent=11 // pred_check
          %p368 = pneg %p258
        $region50: #{encoder_layer_forward.1} parent=11 // pred_check_branch
          %370 = sbr.rel (%p368) target = $region52
        $region51: #{encoder_layer_forward.1} parent=11 // pred_region
          _
        $region52: #{encoder_layer_forward.1} parent=11 // pred_fallthru
          _
        // Predicated region
        $region53: #{encoder_layer_forward.1} parent=11 // pred_check
          %p371 = pneg %p279
        $region54: #{encoder_layer_forward.1} parent=11 // pred_check_branch
          %373 = sbr.rel (%p371) target = $region56
        $region55: #{encoder_layer_forward.1} parent=11 // pred_region
          _
        $region56: #{encoder_layer_forward.1} parent=11 // pred_fallthru
          _
        // Predicated region
        $region57: #{encoder_layer_forward.1} parent=11 // pred_check
          %p374 = pneg %p300
        $region58: #{encoder_layer_forward.1} parent=11 // pred_check_branch
          %376 = sbr.rel (%p374) target = $region60
        $region59: #{encoder_layer_forward.1} parent=11 // pred_region
          _
        $region60: #{encoder_layer_forward.1} parent=11 // pred_fallthru
          _
      $region12: #{encoder_layer_forward.1} parent=5 // pred_fallthru
        _
      %p377 = scmp.lt.s32.totalorder %s22, 2
      // Predicated region
      $region61: #{encoder_layer_forward.1} parent=5 // pred_check
        %p378 = pneg %p377
      $region62: #{encoder_layer_forward.1} parent=5 // pred_check_branch
        %380 = sbr.rel (%p378) target = $region64
      $region63: #{encoder_layer_forward.1} parent=5 // pred_region
        // Predicated region
        $region65: #{encoder_layer_forward.1} parent=63 // pred_check
          %p381 = pneg %p42
        $region66: #{encoder_layer_forward.1} parent=63 // pred_check_branch
          %383 = sbr.rel (%p381) target = $region68
        $region67: #{encoder_layer_forward.1} parent=63 // pred_region
          %p384 = scmp.lt.s32.totalorder %s22, 1
          %s385 = scalar_select %p384, %s22, 1
          %s386 = smul.addr %s385, 8
          %s387 = scalar_lea.vmem %s0, %s386
        $region68: #{encoder_layer_forward.1} parent=63 // pred_fallthru
          _
      $region64: #{encoder_layer_forward.1} parent=5 // pred_fallthru
        _
      %p388 = scmp.le.s32.totalorder 1, %s22
      %p389 = scmp.lt.s32.totalorder %s22, 3
      %p390 = pnand %p388, %p389
      %p391 = pneg %p390
      // Predicated region
      $region69: #{encoder_layer_forward.1} parent=5 // pred_check
        _
      $region70: #{encoder_layer_forward.1} parent=5 // pred_check_branch
        %393 = sbr.rel (%p390) target = $region72
      $region71: #{encoder_layer_forward.1} parent=5 // pred_region
        %s394 = ssub.s32 %s22, 1
        %p395 = scmp.lt.s32.totalorder %s27, 1
        %s396 = scalar_select %p395, %s27, 1
        %s397 = smul.addr %s396, 8
        %s398 = scalar_lea.vmem %s0, %s397
        %p399 = pneg %p48
        %p400 = pneg %p45
        %p401 = pneg %p69
        %p402 = pneg %p66
        %p403 = pneg %p90
        %p404 = pneg %p87
        %p405 = pneg %p111
        %p406 = pneg %p108
        %p407 = pneg %p132
        %p408 = pneg %p129
        %p409 = pneg %p153
        %p410 = pneg %p150
        %p411 = pneg %p174
        %p412 = pneg %p171
        %p413 = pneg %p195
        %p414 = pneg %p192
        %p415 = pneg %p216
        %p416 = pneg %p213
        %p417 = pneg %p237
        %p418 = pneg %p234
        %p419 = pneg %p258
        %p420 = pneg %p255
        %p421 = pneg %p279
        %p422 = pneg %p276
        %p423 = pneg %p300
        %p424 = pneg %p297
        %p425 = pneg %p326
        %p426 = pneg %p323
        %s427 = sand.u32 %s313, 1
        %s428 = scalar_lea.sflag [#allocation3], %s427
        %s429 = sand.u32 %s313, 1
        %s430 = smul.addr %s429, 8
        %s431 = scalar_lea.vmem [#allocation2], %s430
        %p432 = scmp.lt.s32.totalorder %s27, 1
        %s433 = scalar_select %p432, %s27, 1
        %s434 = smul.addr %s433, 8
        %s435 = scalar_lea.vmem %s0, %s434
        %v437 = vld [vmem:[%s435] sm:$0xff]
        %v438 = vpack.c.bf16 %v437, %v437
        %v439 = vld [vmem:[%s1] sm:$0xff]
        %v440 = vld [vmem:[%s1 + $0x8] sm:$0xff]
        %v441 = vld [vmem:[%s1 + $0x10] sm:$0xff]
        %v442 = vld [vmem:[%s1 + $0x18] sm:$0xff]
        %v443 = vld [vmem:[%s1 + $0x20] sm:$0xff]
        %v444 = vld [vmem:[%s1 + $0x28] sm:$0xff]
        %v445 = vld [vmem:[%s1 + $0x30] sm:$0xff]
        %v446 = vld [vmem:[%s1 + $0x38] sm:$0xff]
        %v447 = vld [vmem:[%s1 + $0x40] sm:$0xff]
        %v448 = vld [vmem:[%s1 + $0x48] sm:$0xff]
        %v449 = vld [vmem:[%s1 + $0x50] sm:$0xff]
        %v450 = vld [vmem:[%s1 + $0x58] sm:$0xff]
        %v451 = vld [vmem:[%s1 + $0x60] sm:$0xff]
        %v452 = vld [vmem:[%s1 + $0x68] sm:$0xff]
        %v453 = vld [vmem:[%s1 + $0x70] sm:$0xff]
        %v454 = vld [vmem:[%s1 + $0x78] sm:$0xff]
        %v455 = vld [vmem:[%s1 + $0x80] sm:$0xff]
        %v456 = vld [vmem:[%s1 + $0x88] sm:$0xff]
        %v457 = vld [vmem:[%s1 + $0x90] sm:$0xff]
        %v458 = vld [vmem:[%s1 + $0x98] sm:$0xff]
        %v459 = vld [vmem:[%s1 + $0xa0] sm:$0xff]
        %v460 = vld [vmem:[%s1 + $0xa8] sm:$0xff]
        %v461 = vld [vmem:[%s1 + $0xb0] sm:$0xff]
        %v462 = vld [vmem:[%s1 + $0xb8] sm:$0xff]
        %v463 = vld [vmem:[%s2] sm:$0xff]
        %v464 = vld [vmem:[%s2 + $0x8] sm:$0xf]
        %v467 = vlaneseq
        %v468 = vshrl.u32 %v467, 7
        %v469 = vsub.s32 0, %v468
        %v470 = vrot.slane %v463, %v469
        %v471 = vlaneseq
        %v472 = vshrl.u32 %v471, 7
        %v473 = vsub.s32 1, %v472
        %v474 = vrot.slane %v463, %v473
        %v475 = vlaneseq
        %v476 = vshrl.u32 %v475, 7
        %v477 = vsub.s32 2, %v476
        %v478 = vrot.slane %v463, %v477
        %v479 = vlaneseq
        %v480 = vshrl.u32 %v479, 7
        %v481 = vsub.s32 3, %v480
        %v482 = vrot.slane %v463, %v481
        %v483 = vlaneseq
        %v484 = vshrl.u32 %v483, 7
        %v485 = vsub.s32 4, %v484
        %v486 = vrot.slane %v463, %v485
        %v487 = vlaneseq
        %v488 = vshrl.u32 %v487, 7
        %v489 = vsub.s32 5, %v488
        %v490 = vrot.slane %v463, %v489
        %v491 = vlaneseq
        %v492 = vshrl.u32 %v491, 7
        %v493 = vsub.s32 6, %v492
        %v494 = vrot.slane %v463, %v493
        %v495 = vlaneseq
        %v496 = vshrl.u32 %v495, 7
        %v497 = vsub.s32 7, %v496
        %v498 = vrot.slane %v463, %v497
        %v499 = vlaneseq
        %v500 = vshrl.u32 %v499, 7
        %v501 = vsub.s32 0, %v500
        %v502 = vrot.slane %v464, %v501
        %v503 = vlaneseq
        %v504 = vshrl.u32 %v503, 7
        %v505 = vsub.s32 1, %v504
        %v506 = vrot.slane %v464, %v505
        %v507 = vlaneseq
        %v508 = vshrl.u32 %v507, 7
        %v509 = vsub.s32 2, %v508
        %v510 = vrot.slane %v464, %v509
        %v511 = vlaneseq
        %v512 = vshrl.u32 %v511, 7
        %v513 = vsub.s32 3, %v512
        %v514 = vrot.slane %v464, %v513
        %v551 = vunpack.c.l.b16 %v439
        %v552 = vunpack.c.h.b16 %v439
        %v553 = vunpack.c.l.b16 %v440
        %v554 = vunpack.c.h.b16 %v440
        %v555 = vunpack.c.l.b16 %v441
        %v556 = vunpack.c.h.b16 %v441
        %v557 = vunpack.c.l.b16 %v442
        %v558 = vunpack.c.h.b16 %v442
        %v559 = vunpack.c.l.b16 %v443
        %v560 = vunpack.c.h.b16 %v443
        %v561 = vunpack.c.l.b16 %v444
        %v562 = vunpack.c.h.b16 %v444
        %v563 = vunpack.c.l.b16 %v445
        %v564 = vunpack.c.h.b16 %v445
        %v565 = vunpack.c.l.b16 %v446
        %v566 = vunpack.c.h.b16 %v446
        %v567 = vunpack.c.l.b16 %v447
        %v568 = vunpack.c.h.b16 %v447
        %v569 = vunpack.c.l.b16 %v448
        %v570 = vunpack.c.h.b16 %v448
        %v571 = vunpack.c.l.b16 %v449
        %v572 = vunpack.c.h.b16 %v449
        %v573 = vunpack.c.l.b16 %v450
        %v574 = vunpack.c.h.b16 %v450
        %v575 = vunpack.c.l.b16 %v451
        %v576 = vunpack.c.h.b16 %v451
        %v577 = vunpack.c.l.b16 %v452
        %v578 = vunpack.c.h.b16 %v452
        %v579 = vunpack.c.l.b16 %v453
        %v580 = vunpack.c.h.b16 %v453
        %v581 = vunpack.c.l.b16 %v454
        %v582 = vunpack.c.h.b16 %v454
        %v583 = vunpack.c.l.b16 %v455
        %v584 = vunpack.c.h.b16 %v455
        %v585 = vunpack.c.l.b16 %v456
        %v586 = vunpack.c.h.b16 %v456
        %v587 = vunpack.c.l.b16 %v457
        %v588 = vunpack.c.h.b16 %v457
        %v589 = vunpack.c.l.b16 %v458
        %v590 = vunpack.c.h.b16 %v458
        %v591 = vunpack.c.l.b16 %v459
        %v592 = vunpack.c.h.b16 %v459
        %v593 = vunpack.c.l.b16 %v460
        %v594 = vunpack.c.h.b16 %v460
        %v595 = vunpack.c.l.b16 %v461
        %v596 = vunpack.c.h.b16 %v461
        %v597 = vunpack.c.l.b16 %v462
        %v598 = vunpack.c.h.b16 %v462
        %v599 = vpack.c.b16 %v563, %v551
        %v600 = vpack.c.b16 %v564, %v552
        %v601 = vpack.c.b16 %v565, %v553
        %v602 = vpack.c.b16 %v566, %v554
        %v603 = vpack.c.b16 %v567, %v555
        %v604 = vpack.c.b16 %v568, %v556
        %v605 = vpack.c.b16 %v569, %v557
        %v606 = vpack.c.b16 %v570, %v558
        %v607 = vpack.c.b16 %v571, %v559
        %v608 = vpack.c.b16 %v572, %v560
        %v609 = vpack.c.b16 %v573, %v561
        %v610 = vpack.c.b16 %v574, %v562
        %v611 = vpack.c.b16 %v587, %v575
        %v612 = vpack.c.b16 %v588, %v576
        %v613 = vpack.c.b16 %v589, %v577
        %v614 = vpack.c.b16 %v590, %v578
        %v615 = vpack.c.b16 %v591, %v579
        %v616 = vpack.c.b16 %v592, %v580
        %v617 = vpack.c.b16 %v593, %v581
        %v618 = vpack.c.b16 %v594, %v582
        %v619 = vpack.c.b16 %v595, %v583
        %v620 = vpack.c.b16 %v596, %v584
        %v621 = vpack.c.b16 %v597, %v585
        %v622 = vpack.c.b16 %v598, %v586
        %vm647 = vcmask 261120
        %v649 = vsel %vm647, %v438, 0
        %651 = vmatprep.subr.bf16.mxu0 0
        %652 = vmatpush1.bf16.msra.mxu0 0
        %653 = vmatprep.subr.bf16.mxu0 0
        %654 = vmatpush1.bf16.msra.mxu0 0
        %655 = vmatprep.subr.bf16.mxu0 0
        %656 = vmatpush1.bf16.msra.mxu0 0
        %657 = vmatprep.subr.bf16.mxu0 0
        %658 = vmatpush1.bf16.msra.mxu0 0
        %659 = vmatprep.subr.bf16.mxu0 0
        %660 = vmatpush1.bf16.msra.mxu0 0
        %661 = vmatprep.subr.bf16.mxu0 0
        %662 = vmatpush1.bf16.msra.mxu0 0
        %663 = vmatprep.subr.bf16.mxu0 %v612
        %664 = vmatpush1.bf16.msra.mxu0 %v611
        %665 = vmatprep.subr.bf16.mxu0 %v600
        %666 = vmatpush1.bf16.msra.mxu0 %v599
        %667 = vmatprep.subr.bf16.mxu0 0
        %668 = vmatpush2.bf16.msra.mxu0 0
        %669 = vmatprep.subr.bf16.mxu0 0
        %670 = vmatpush2.bf16.msra.mxu0 0
        %671 = vmatprep.subr.bf16.mxu0 0
        %672 = vmatpush2.bf16.msra.mxu0 0
        %673 = vmatprep.subr.bf16.mxu0 0
        %674 = vmatpush2.bf16.msra.mxu0 0
        %675 = vmatprep.subr.bf16.mxu0 0
        %676 = vmatpush2.bf16.msra.mxu0 0
        %677 = vmatprep.subr.bf16.mxu0 0
        %678 = vmatpush2.bf16.msra.mxu0 0
        %679 = vmatprep.subr.bf16.mxu0 0
        %680 = vmatpush2.bf16.msra.mxu0 0
        %681 = vmatprep.subr.bf16.mxu0 0
        %682 = vmatpush2.bf16.msra.mxu0 0
        %683 = vmatprep.mubr.bf16.mxu0 0
        %684 = vmatmul.mubr.bf16.gmra.mxu0 %v649
        %v685 = vpop.f32.mrf.mxu0
        %v686 = vadd.f32 %v470, %v685
        %v687 = vpop.f32.mrf.mxu0
        %v688 = vadd.f32 %v474, %v687
        %v689 = vpop.f32.mrf.mxu0
        %v690 = vpop.f32.mrf.mxu0
        %691 = vdwg.mxu0
        %692 = vmatprep.subr.bf16.mxu0 0
        %693 = vmatpush1.bf16.msra.mxu0 0
        %694 = vmatprep.subr.bf16.mxu0 0
        %695 = vmatpush1.bf16.msra.mxu0 0
        %696 = vmatprep.subr.bf16.mxu0 0
        %697 = vmatpush1.bf16.msra.mxu0 0
        %698 = vmatprep.subr.bf16.mxu0 0
        %699 = vmatpush1.bf16.msra.mxu0 0
        %700 = vmatprep.subr.bf16.mxu0 0
        %701 = vmatpush1.bf16.msra.mxu0 0
        %702 = vmatprep.subr.bf16.mxu0 0
        %703 = vmatpush1.bf16.msra.mxu0 0
        %704 = vmatprep.subr.bf16.mxu0 %v614
        %705 = vmatpush1.bf16.msra.mxu0 %v613
        %706 = vmatprep.subr.bf16.mxu0 %v602
        %707 = vmatpush1.bf16.msra.mxu0 %v601
        %708 = vmatprep.subr.bf16.mxu0 0
        %709 = vmatpush2.bf16.msra.mxu0 0
        %710 = vmatprep.subr.bf16.mxu0 0
        %711 = vmatpush2.bf16.msra.mxu0 0
        %712 = vmatprep.subr.bf16.mxu0 0
        %713 = vmatpush2.bf16.msra.mxu0 0
        %714 = vmatprep.subr.bf16.mxu0 0
        %715 = vmatpush2.bf16.msra.mxu0 0
        %716 = vmatprep.subr.bf16.mxu0 0
        %717 = vmatpush2.bf16.msra.mxu0 0
        %718 = vmatprep.subr.bf16.mxu0 0
        %719 = vmatpush2.bf16.msra.mxu0 0
        %720 = vmatprep.subr.bf16.mxu0 0
        %721 = vmatpush2.bf16.msra.mxu0 0
        %722 = vmatprep.subr.bf16.mxu0 0
        %723 = vmatpush2.bf16.msra.mxu0 0
        %724 = vmatprep.mubr.bf16.mxu0 0
        %725 = vmatmul.mubr.bf16.gmra.mxu0 %v649
        %v726 = vpop.f32.mrf.mxu0
        %v727 = vadd.f32 %v478, %v726
        %v728 = vpop.f32.mrf.mxu0
        %v729 = vadd.f32 %v482, %v728
        %v730 = vpop.f32.mrf.mxu0
        %v731 = vpop.f32.mrf.mxu0
        %732 = vdwg.mxu0
        %733 = vmatprep.subr.bf16.mxu0 0
        %734 = vmatpush1.bf16.msra.mxu0 0
        %735 = vmatprep.subr.bf16.mxu0 0
        %736 = vmatpush1.bf16.msra.mxu0 0
        %737 = vmatprep.subr.bf16.mxu0 0
        %738 = vmatpush1.bf16.msra.mxu0 0
        %739 = vmatprep.subr.bf16.mxu0 0
        %740 = vmatpush1.bf16.msra.mxu0 0
        %741 = vmatprep.subr.bf16.mxu0 0
        %742 = vmatpush1.bf16.msra.mxu0 0
        %743 = vmatprep.subr.bf16.mxu0 0
        %744 = vmatpush1.bf16.msra.mxu0 0
        %745 = vmatprep.subr.bf16.mxu0 %v616
        %746 = vmatpush1.bf16.msra.mxu0 %v615
        %747 = vmatprep.subr.bf16.mxu0 %v604
        %748 = vmatpush1.bf16.msra.mxu0 %v603
        %749 = vmatprep.subr.bf16.mxu0 0
        %750 = vmatpush2.bf16.msra.mxu0 0
        %751 = vmatprep.subr.bf16.mxu0 0
        %752 = vmatpush2.bf16.msra.mxu0 0
        %753 = vmatprep.subr.bf16.mxu0 0
        %754 = vmatpush2.bf16.msra.mxu0 0
        %755 = vmatprep.subr.bf16.mxu0 0
        %756 = vmatpush2.bf16.msra.mxu0 0
        %757 = vmatprep.subr.bf16.mxu0 0
        %758 = vmatpush2.bf16.msra.mxu0 0
        %759 = vmatprep.subr.bf16.mxu0 0
        %760 = vmatpush2.bf16.msra.mxu0 0
        %761 = vmatprep.subr.bf16.mxu0 0
        %762 = vmatpush2.bf16.msra.mxu0 0
        %763 = vmatprep.subr.bf16.mxu0 0
        %764 = vmatpush2.bf16.msra.mxu0 0
        %765 = vmatprep.mubr.bf16.mxu0 0
        %766 = vmatmul.mubr.bf16.gmra.mxu0 %v649
        %v767 = vpop.f32.mrf.mxu0
        %v768 = vadd.f32 %v486, %v767
        %v769 = vpop.f32.mrf.mxu0
        %v770 = vadd.f32 %v490, %v769
        %v771 = vpop.f32.mrf.mxu0
        %v772 = vpop.f32.mrf.mxu0
        %773 = vdwg.mxu0
        %774 = vmatprep.subr.bf16.mxu0 0
        %775 = vmatpush1.bf16.msra.mxu0 0
        %776 = vmatprep.subr.bf16.mxu0 0
        %777 = vmatpush1.bf16.msra.mxu0 0
        %778 = vmatprep.subr.bf16.mxu0 0
        %779 = vmatpush1.bf16.msra.mxu0 0
        %780 = vmatprep.subr.bf16.mxu0 0
        %781 = vmatpush1.bf16.msra.mxu0 0
        %782 = vmatprep.subr.bf16.mxu0 0
        %783 = vmatpush1.bf16.msra.mxu0 0
        %784 = vmatprep.subr.bf16.mxu0 0
        %785 = vmatpush1.bf16.msra.mxu0 0
        %786 = vmatprep.subr.bf16.mxu0 %v618
        %787 = vmatpush1.bf16.msra.mxu0 %v617
        %788 = vmatprep.subr.bf16.mxu0 %v606
        %789 = vmatpush1.bf16.msra.mxu0 %v605
        %790 = vmatprep.subr.bf16.mxu0 0
        %791 = vmatpush2.bf16.msra.mxu0 0
        %792 = vmatprep.subr.bf16.mxu0 0
        %793 = vmatpush2.bf16.msra.mxu0 0
        %794 = vmatprep.subr.bf16.mxu0 0
        %795 = vmatpush2.bf16.msra.mxu0 0
        %796 = vmatprep.subr.bf16.mxu0 0
        %797 = vmatpush2.bf16.msra.mxu0 0
        %798 = vmatprep.subr.bf16.mxu0 0
        %799 = vmatpush2.bf16.msra.mxu0 0
        %800 = vmatprep.subr.bf16.mxu0 0
        %801 = vmatpush2.bf16.msra.mxu0 0
        %802 = vmatprep.subr.bf16.mxu0 0
        %803 = vmatpush2.bf16.msra.mxu0 0
        %804 = vmatprep.subr.bf16.mxu0 0
        %805 = vmatpush2.bf16.msra.mxu0 0
        %806 = vmatprep.mubr.bf16.mxu0 0
        %807 = vmatmul.mubr.bf16.gmra.mxu0 %v649
        %v808 = vpop.f32.mrf.mxu0
        %v809 = vadd.f32 %v494, %v808
        %v810 = vpop.f32.mrf.mxu0
        %v811 = vadd.f32 %v498, %v810
        %v812 = vpop.f32.mrf.mxu0
        %v813 = vpop.f32.mrf.mxu0
        %814 = vdwg.mxu0
        %815 = vmatprep.subr.bf16.mxu0 0
        %816 = vmatpush1.bf16.msra.mxu0 0
        %817 = vmatprep.subr.bf16.mxu0 0
        %818 = vmatpush1.bf16.msra.mxu0 0
        %819 = vmatprep.subr.bf16.mxu0 0
        %820 = vmatpush1.bf16.msra.mxu0 0
        %821 = vmatprep.subr.bf16.mxu0 0
        %822 = vmatpush1.bf16.msra.mxu0 0
        %823 = vmatprep.subr.bf16.mxu0 0
        %824 = vmatpush1.bf16.msra.mxu0 0
        %825 = vmatprep.subr.bf16.mxu0 0
        %826 = vmatpush1.bf16.msra.mxu0 0
        %827 = vmatprep.subr.bf16.mxu0 %v620
        %828 = vmatpush1.bf16.msra.mxu0 %v619
        %829 = vmatprep.subr.bf16.mxu0 %v608
        %830 = vmatpush1.bf16.msra.mxu0 %v607
        %831 = vmatprep.subr.bf16.mxu0 0
        %832 = vmatpush2.bf16.msra.mxu0 0
        %833 = vmatprep.subr.bf16.mxu0 0
        %834 = vmatpush2.bf16.msra.mxu0 0
        %835 = vmatprep.subr.bf16.mxu0 0
        %836 = vmatpush2.bf16.msra.mxu0 0
        %837 = vmatprep.subr.bf16.mxu0 0
        %838 = vmatpush2.bf16.msra.mxu0 0
        %839 = vmatprep.subr.bf16.mxu0 0
        %840 = vmatpush2.bf16.msra.mxu0 0
        %841 = vmatprep.subr.bf16.mxu0 0
        %842 = vmatpush2.bf16.msra.mxu0 0
        %843 = vmatprep.subr.bf16.mxu0 0
        %844 = vmatpush2.bf16.msra.mxu0 0
        %845 = vmatprep.subr.bf16.mxu0 0
        %846 = vmatpush2.bf16.msra.mxu0 0
        %847 = vmatprep.mubr.bf16.mxu0 0
        %848 = vmatmul.mubr.bf16.gmra.mxu0 %v649
        %v849 = vpop.f32.mrf.mxu0
        %v850 = vadd.f32 %v502, %v849
        %v851 = vpop.f32.mrf.mxu0
        %v852 = vadd.f32 %v506, %v851
        %v853 = vpop.f32.mrf.mxu0
        %v854 = vpop.f32.mrf.mxu0
        %855 = vdwg.mxu0
        %856 = vmatprep.subr.bf16.mxu0 0
        %857 = vmatpush1.bf16.msra.mxu0 0
        %858 = vmatprep.subr.bf16.mxu0 0
        %859 = vmatpush1.bf16.msra.mxu0 0
        %860 = vmatprep.subr.bf16.mxu0 0
        %861 = vmatpush1.bf16.msra.mxu0 0
        %862 = vmatprep.subr.bf16.mxu0 0
        %863 = vmatpush1.bf16.msra.mxu0 0
        %864 = vmatprep.subr.bf16.mxu0 0
        %865 = vmatpush1.bf16.msra.mxu0 0
        %866 = vmatprep.subr.bf16.mxu0 0
        %867 = vmatpush1.bf16.msra.mxu0 0
        %868 = vmatprep.subr.bf16.mxu0 %v622
        %869 = vmatpush1.bf16.msra.mxu0 %v621
        %870 = vmatprep.subr.bf16.mxu0 %v610
        %871 = vmatpush1.bf16.msra.mxu0 %v609
        %872 = vmatprep.subr.bf16.mxu0 0
        %873 = vmatpush2.bf16.msra.mxu0 0
        %874 = vmatprep.subr.bf16.mxu0 0
        %875 = vmatpush2.bf16.msra.mxu0 0
        %876 = vmatprep.subr.bf16.mxu0 0
        %877 = vmatpush2.bf16.msra.mxu0 0
        %878 = vmatprep.subr.bf16.mxu0 0
        %879 = vmatpush2.bf16.msra.mxu0 0
        %880 = vmatprep.subr.bf16.mxu0 0
        %881 = vmatpush2.bf16.msra.mxu0 0
        %882 = vmatprep.subr.bf16.mxu0 0
        %883 = vmatpush2.bf16.msra.mxu0 0
        %884 = vmatprep.subr.bf16.mxu0 0
        %885 = vmatpush2.bf16.msra.mxu0 0
        %886 = vmatprep.subr.bf16.mxu0 0
        %887 = vmatpush2.bf16.msra.mxu0 0
        %888 = vmatprep.mubr.bf16.mxu0 0
        %889 = vmatmul.mubr.bf16.gmra.mxu0 %v649
        %v890 = vpop.f32.mrf.mxu0
        %v891 = vadd.f32 %v510, %v890
        %v892 = vpop.f32.mrf.mxu0
        %v893 = vadd.f32 %v514, %v892
        %v894 = vpop.f32.mrf.mxu0
        %v895 = vpop.f32.mrf.mxu0
        %896 = vdwg.mxu0
        %v897 = vpack.c.bf16 %v686, %v686
        %v898 = vpack.c.bf16 %v688, %v688
        %v899 = vpack.c.bf16 %v727, %v727
        %v900 = vpack.c.bf16 %v729, %v729
        %v901 = vpack.c.bf16 %v768, %v768
        %v902 = vpack.c.bf16 %v770, %v770
        %v903 = vpack.c.bf16 %v809, %v809
        %v904 = vpack.c.bf16 %v811, %v811
        %v905 = vpack.c.bf16 %v850, %v850
        %v906 = vpack.c.bf16 %v852, %v852
        %v907 = vpack.c.bf16 %v891, %v891
        %v908 = vpack.c.bf16 %v893, %v893
        %909 = vmatprep.subr.bf16.mxu0 0
        %910 = vmatpush1.bf16.xpose.msra.mxu0 0
        %911 = vmatprep.subr.bf16.mxu0 0
        %912 = vmatpush1.bf16.xpose.msra.mxu0 0
        %913 = vmatprep.subr.bf16.mxu0 0
        %914 = vmatpush1.bf16.xpose.msra.mxu0 0
        %915 = vmatprep.subr.bf16.mxu0 0
        %916 = vmatpush1.bf16.xpose.msra.mxu0 0
        %917 = vmatprep.subr.bf16.mxu0 0
        %918 = vmatpush1.bf16.xpose.msra.mxu0 0
        %919 = vmatprep.subr.bf16.mxu0 0
        %920 = vmatpush1.bf16.xpose.msra.mxu0 0
        %921 = vmatprep.subr.bf16.mxu0 0
        %922 = vmatpush1.bf16.xpose.msra.mxu0 0
        %923 = vmatprep.subr.bf16.mxu0 0
        %924 = vmatpush1.bf16.xpose.msra.mxu0 %v901
        %925 = vmatprep.subr.bf16.mxu0 0
        %926 = vmatpush2.bf16.xpose.msra.mxu0 0
        %927 = vmatprep.subr.bf16.mxu0 0
        %928 = vmatpush2.bf16.xpose.msra.mxu0 0
        %929 = vmatprep.subr.bf16.mxu0 0
        %930 = vmatpush2.bf16.xpose.msra.mxu0 0
        %931 = vmatprep.subr.bf16.mxu0 0
        %932 = vmatpush2.bf16.xpose.msra.mxu0 0
        %933 = vmatprep.subr.bf16.mxu0 0
        %934 = vmatpush2.bf16.xpose.msra.mxu0 0
        %935 = vmatprep.subr.bf16.mxu0 0
        %936 = vmatpush2.bf16.xpose.msra.mxu0 0
        %937 = vmatprep.subr.bf16.mxu0 0
        %938 = vmatpush2.bf16.xpose.msra.mxu0 0
        %939 = vmatprep.subr.bf16.mxu0 0
        %940 = vmatpush2.bf16.xpose.msra.mxu0 0
        %941 = vmatprep.mubr.bf16.mxu0 0
        %942 = vmatmul.mubr.bf16.gmra.mxu0 %v897
        %v943 = vpop.f32.mrf.mxu0
        %v944 = vadd.f32 0.0, %v943
        %v945 = vpop.f32.mrf.mxu0
        %v946 = vpop.f32.mrf.mxu0
        %v947 = vpop.f32.mrf.mxu0
        %948 = vdwg.mxu0
        %v949 = vmul.f32 %v944, 0.35355338
        %vm950 = vcmask 64512
        %v951 = vsel %vm950, %v949, -inf
        %952 = vmax.xlane.f32.xlu0 %v951
        %v953 = vpop.xlane.xlu0 %952
        %v954 = vsub.f32 %v949, %v953
        %v955 = vmul.f32 %v954, 1.442695
        %v956 = vpow.pop %v955
        %v957 = vsel %vm950, %v956, 0.0
        %958 = vadd.xlane.f32.xlu0 %v957
        %v959 = vpop.xlane.xlu0 %958
        %v960 = vrcp.pop %v959
        %v961 = vmul.f32 %v956, %v960
        %v962 = vpack.c.bf16 %v961, %v961
        %v964 = vsel %vm950, %v962, 0
        %vm966 = vcmask 1043456
        %v968 = vsel %vm966, %v905, 0
        %970 = vmatprep.subr.bf16.mxu0 0
        %971 = vmatpush1.bf16.msra.mxu0 0
        %972 = vmatprep.subr.bf16.mxu0 0
        %973 = vmatpush1.bf16.msra.mxu0 0
        %974 = vmatprep.subr.bf16.mxu0 0
        %975 = vmatpush1.bf16.msra.mxu0 0
        %976 = vmatprep.subr.bf16.mxu0 0
        %977 = vmatpush1.bf16.msra.mxu0 0
        %978 = vmatprep.subr.bf16.mxu0 0
        %979 = vmatpush1.bf16.msra.mxu0 0
        %980 = vmatprep.subr.bf16.mxu0 0
        %981 = vmatpush1.bf16.msra.mxu0 0
        %982 = vmatprep.subr.bf16.mxu0 0
        %983 = vmatpush1.bf16.msra.mxu0 0
        %984 = vmatprep.subr.bf16.mxu0 0
        %985 = vmatpush1.bf16.msra.mxu0 %v968
        %986 = vmatprep.subr.bf16.mxu0 0
        %987 = vmatpush2.bf16.msra.mxu0 0
        %988 = vmatprep.subr.bf16.mxu0 0
        %989 = vmatpush2.bf16.msra.mxu0 0
        %990 = vmatprep.subr.bf16.mxu0 0
        %991 = vmatpush2.bf16.msra.mxu0 0
        %992 = vmatprep.subr.bf16.mxu0 0
        %993 = vmatpush2.bf16.msra.mxu0 0
        %994 = vmatprep.subr.bf16.mxu0 0
        %995 = vmatpush2.bf16.msra.mxu0 0
        %996 = vmatprep.subr.bf16.mxu0 0
        %997 = vmatpush2.bf16.msra.mxu0 0
        %998 = vmatprep.subr.bf16.mxu0 0
        %999 = vmatpush2.bf16.msra.mxu0 0
        %1000 = vmatprep.subr.bf16.mxu0 0
        %1001 = vmatpush2.bf16.msra.mxu0 0
        %1002 = vmatprep.mubr.bf16.mxu0 0
        %1003 = vmatmul.mubr.bf16.gmra.mxu0 %v964
        %v1004 = vpop.f32.mrf.mxu0
        %v1005 = vadd.f32 0.0, %v1004
        %v1006 = vpop.f32.mrf.mxu0
        %v1007 = vpop.f32.mrf.mxu0
        %v1008 = vpop.f32.mrf.mxu0
        %1009 = vdwg.mxu0
        %v1010 = vpack.c.bf16 %v1005, %v1005
        %v1011 = vld [vmem:[%s3] sm:$0xf]
        %v1012 = vld [vmem:[%s3 + $0x4] sm:$0xf]
        %v1013 = vld [vmem:[%s3 + $0x8] sm:$0xf]
        %v1014 = vld [vmem:[%s3 + $0xc] sm:$0xf]
        %v1015 = vld [vmem:[%s3 + $0x10] sm:$0xf]
        %v1016 = vld [vmem:[%s3 + $0x14] sm:$0xf]
        %v1017 = vld [vmem:[%s3 + $0x18] sm:$0xf]
        %v1018 = vld [vmem:[%s3 + $0x1c] sm:$0xf]
        %v1019 = vld [vmem:[%s3 + $0x20] sm:$0xf]
        %v1020 = vld [vmem:[%s3 + $0x24] sm:$0xf]
        %v1021 = vld [vmem:[%s3 + $0x28] sm:$0xf]
        %v1022 = vld [vmem:[%s3 + $0x2c] sm:$0xf]
        %v1023 = vld [vmem:[%s3 + $0x30] sm:$0xf]
        %v1024 = vld [vmem:[%s3 + $0x34] sm:$0xf]
        %v1025 = vld [vmem:[%s3 + $0x38] sm:$0xf]
        %v1026 = vld [vmem:[%s3 + $0x3c] sm:$0xf]
        %1027 = vmatprep.subr.bf16.mxu0 0
        %1028 = vmatpush1.bf16.xpose.msra.mxu0 0
        %1029 = vmatprep.subr.bf16.mxu0 0
        %1030 = vmatpush1.bf16.xpose.msra.mxu0 0
        %1031 = vmatprep.subr.bf16.mxu0 0
        %1032 = vmatpush1.bf16.xpose.msra.mxu0 0
        %1033 = vmatprep.subr.bf16.mxu0 0
        %1034 = vmatpush1.bf16.xpose.msra.mxu0 0
        %1035 = vmatprep.subr.bf16.mxu0 0
        %1036 = vmatpush1.bf16.xpose.msra.mxu0 0
        %1037 = vmatprep.subr.bf16.mxu0 0
        %1038 = vmatpush1.bf16.xpose.msra.mxu0 0
        %1039 = vmatprep.subr.bf16.mxu0 0
        %1040 = vmatpush1.bf16.xpose.msra.mxu0 0
        %1041 = vmatprep.subr.bf16.mxu0 0
        %1042 = vmatpush1.bf16.xpose.msra.mxu0 %v902
        %1043 = vmatprep.subr.bf16.mxu0 0
        %1044 = vmatpush2.bf16.xpose.msra.mxu0 0
        %1045 = vmatprep.subr.bf16.mxu0 0
        %1046 = vmatpush2.bf16.xpose.msra.mxu0 0
        %1047 = vmatprep.subr.bf16.mxu0 0
        %1048 = vmatpush2.bf16.xpose.msra.mxu0 0
        %1049 = vmatprep.subr.bf16.mxu0 0
        %1050 = vmatpush2.bf16.xpose.msra.mxu0 0
        %1051 = vmatprep.subr.bf16.mxu0 0
        %1052 = vmatpush2.bf16.xpose.msra.mxu0 0
        %1053 = vmatprep.subr.bf16.mxu0 0
        %1054 = vmatpush2.bf16.xpose.msra.mxu0 0
        %1055 = vmatprep.subr.bf16.mxu0 0
        %1056 = vmatpush2.bf16.xpose.msra.mxu0 0
        %1057 = vmatprep.subr.bf16.mxu0 0
        %1058 = vmatpush2.bf16.xpose.msra.mxu0 0
        %1059 = vmatprep.mubr.bf16.mxu0 0
        %1060 = vmatmul.mubr.bf16.gmra.mxu0 %v898
        %v1061 = vpop.f32.mrf.mxu0
        %v1062 = vadd.f32 0.0, %v1061
        %v1063 = vpop.f32.mrf.mxu0
        %v1064 = vpop.f32.mrf.mxu0
        %v1065 = vpop.f32.mrf.mxu0
        %1066 = vdwg.mxu0
        %v1067 = vmul.f32 %v1062, 0.35355338
        %v1068 = vsel %vm950, %v1067, -inf
        %1069 = vmax.xlane.f32.xlu0 %v1068
        %v1070 = vpop.xlane.xlu0 %1069
        %v1071 = vsub.f32 %v1067, %v1070
        %v1072 = vmul.f32 %v1071, 1.442695
        %v1073 = vpow.pop %v1072
        %v1074 = vsel %vm950, %v1073, 0.0
        %1075 = vadd.xlane.f32.xlu0 %v1074
        %v1076 = vpop.xlane.xlu0 %1075
        %v1077 = vrcp.pop %v1076
        %v1078 = vmul.f32 %v1073, %v1077
        %v1079 = vpack.c.bf16 %v1078, %v1078
        %v1081 = vsel %vm950, %v1079, 0
        %v1084 = vsel %vm966, %v906, 0
        %1086 = vmatprep.subr.bf16.mxu0 0
        %1087 = vmatpush1.bf16.msra.mxu0 0
        %1088 = vmatprep.subr.bf16.mxu0 0
        %1089 = vmatpush1.bf16.msra.mxu0 0
        %1090 = vmatprep.subr.bf16.mxu0 0
        %1091 = vmatpush1.bf16.msra.mxu0 0
        %1092 = vmatprep.subr.bf16.mxu0 0
        %1093 = vmatpush1.bf16.msra.mxu0 0
        %1094 = vmatprep.subr.bf16.mxu0 0
        %1095 = vmatpush1.bf16.msra.mxu0 0
        %1096 = vmatprep.subr.bf16.mxu0 0
        %1097 = vmatpush1.bf16.msra.mxu0 0
        %1098 = vmatprep.subr.bf16.mxu0 0
        %1099 = vmatpush1.bf16.msra.mxu0 0
        %1100 = vmatprep.subr.bf16.mxu0 0
        %1101 = vmatpush1.bf16.msra.mxu0 %v1084
        %1102 = vmatprep.subr.bf16.mxu0 0
        %1103 = vmatpush2.bf16.msra.mxu0 0
        %1104 = vmatprep.subr.bf16.mxu0 0
        %1105 = vmatpush2.bf16.msra.mxu0 0
        %1106 = vmatprep.subr.bf16.mxu0 0
        %1107 = vmatpush2.bf16.msra.mxu0 0
        %1108 = vmatprep.subr.bf16.mxu0 0
        %1109 = vmatpush2.bf16.msra.mxu0 0
        %1110 = vmatprep.subr.bf16.mxu0 0
        %1111 = vmatpush2.bf16.msra.mxu0 0
        %1112 = vmatprep.subr.bf16.mxu0 0
        %1113 = vmatpush2.bf16.msra.mxu0 0
        %1114 = vmatprep.subr.bf16.mxu0 0
        %1115 = vmatpush2.bf16.msra.mxu0 0
        %1116 = vmatprep.subr.bf16.mxu0 0
        %1117 = vmatpush2.bf16.msra.mxu0 0
        %1118 = vmatprep.mubr.bf16.mxu0 0
        %1119 = vmatmul.mubr.bf16.gmra.mxu0 %v1081
        %v1120 = vpop.f32.mrf.mxu0
        %v1121 = vadd.f32 0.0, %v1120
        %v1122 = vpop.f32.mrf.mxu0
        %v1123 = vpop.f32.mrf.mxu0
        %v1124 = vpop.f32.mrf.mxu0
        %1125 = vdwg.mxu0
        %v1126 = vpack.c.bf16 %v1121, %v1121
        %v1127 = vld [vmem:[%s3 + $0x40] sm:$0xf]
        %v1128 = vld [vmem:[%s3 + $0x44] sm:$0xf]
        %v1129 = vld [vmem:[%s3 + $0x48] sm:$0xf]
        %v1130 = vld [vmem:[%s3 + $0x4c] sm:$0xf]
        %v1131 = vld [vmem:[%s3 + $0x50] sm:$0xf]
        %v1132 = vld [vmem:[%s3 + $0x54] sm:$0xf]
        %v1133 = vld [vmem:[%s3 + $0x58] sm:$0xf]
        %v1134 = vld [vmem:[%s3 + $0x5c] sm:$0xf]
        %v1135 = vld [vmem:[%s3 + $0x60] sm:$0xf]
        %v1136 = vld [vmem:[%s3 + $0x64] sm:$0xf]
        %v1137 = vld [vmem:[%s3 + $0x68] sm:$0xf]
        %v1138 = vld [vmem:[%s3 + $0x6c] sm:$0xf]
        %v1139 = vld [vmem:[%s3 + $0x70] sm:$0xf]
        %v1140 = vld [vmem:[%s3 + $0x74] sm:$0xf]
        %v1141 = vld [vmem:[%s3 + $0x78] sm:$0xf]
        %v1142 = vld [vmem:[%s3 + $0x7c] sm:$0xf]
        %v1159 = vunpack.c.l.b16 %v1127
        %v1160 = vunpack.c.l.b16 %v1128
        %v1161 = vunpack.c.l.b16 %v1129
        %v1162 = vunpack.c.l.b16 %v1130
        %v1163 = vunpack.c.l.b16 %v1131
        %v1164 = vunpack.c.l.b16 %v1132
        %v1165 = vunpack.c.l.b16 %v1133
        %v1166 = vunpack.c.l.b16 %v1134
        %v1167 = vunpack.c.l.b16 %v1135
        %v1168 = vunpack.c.l.b16 %v1136
        %v1169 = vunpack.c.l.b16 %v1137
        %v1170 = vunpack.c.l.b16 %v1138
        %v1171 = vunpack.c.l.b16 %v1139
        %v1172 = vunpack.c.l.b16 %v1140
        %v1173 = vunpack.c.l.b16 %v1141
        %v1174 = vunpack.c.l.b16 %v1142
        %v1175 = vpack.c.b16 %v1160, %v1159
        %v1176 = vpack.c.b16 %v1162, %v1161
        %v1177 = vpack.c.b16 %v1164, %v1163
        %v1178 = vpack.c.b16 %v1166, %v1165
        %v1179 = vpack.c.b16 %v1168, %v1167
        %v1180 = vpack.c.b16 %v1170, %v1169
        %v1181 = vpack.c.b16 %v1172, %v1171
        %v1182 = vpack.c.b16 %v1174, %v1173
        %1191 = vmatprep.subr.bf16.mxu0 0
        %1192 = vmatpush1.bf16.msra.mxu0 %v1182
        %1193 = vmatprep.subr.bf16.mxu0 0
        %1194 = vmatpush1.bf16.msra.mxu0 %v1181
        %1195 = vmatprep.subr.bf16.mxu0 0
        %1196 = vmatpush1.bf16.msra.mxu0 %v1180
        %1197 = vmatprep.subr.bf16.mxu0 0
        %1198 = vmatpush1.bf16.msra.mxu0 %v1179
        %1199 = vmatprep.subr.bf16.mxu0 0
        %1200 = vmatpush1.bf16.msra.mxu0 %v1178
        %1201 = vmatprep.subr.bf16.mxu0 0
        %1202 = vmatpush1.bf16.msra.mxu0 %v1177
        %1203 = vmatprep.subr.bf16.mxu0 0
        %1204 = vmatpush1.bf16.msra.mxu0 %v1176
        %1205 = vmatprep.subr.bf16.mxu0 0
        %1206 = vmatpush1.bf16.msra.mxu0 %v1175
        %1207 = vmatprep.subr.bf16.mxu0 0
        %1208 = vmatpush2.bf16.msra.mxu0 0
        %1209 = vmatprep.subr.bf16.mxu0 0
        %1210 = vmatpush2.bf16.msra.mxu0 0
        %1211 = vmatprep.subr.bf16.mxu0 0
        %1212 = vmatpush2.bf16.msra.mxu0 0
        %1213 = vmatprep.subr.bf16.mxu0 0
        %1214 = vmatpush2.bf16.msra.mxu0 0
        %1215 = vmatprep.subr.bf16.mxu0 0
        %1216 = vmatpush2.bf16.msra.mxu0 0
        %1217 = vmatprep.subr.bf16.mxu0 0
        %1218 = vmatpush2.bf16.msra.mxu0 0
        %1219 = vmatprep.subr.bf16.mxu0 0
        %1220 = vmatpush2.bf16.msra.mxu0 0
        %1221 = vmatprep.subr.bf16.mxu0 0
        %1222 = vmatpush2.bf16.msra.mxu0 0
        %1223 = vmatprep.mubr.bf16.mxu0 0
        %1224 = vmatmul.mubr.bf16.gmra.mxu0 %v1126
        %v1225 = vpop.f32.mrf.mxu0
        %v1226 = vadd.f32 0.0, %v1225
        %v1227 = vpop.f32.mrf.mxu0
        %v1228 = vpop.f32.mrf.mxu0
        %v1229 = vpop.f32.mrf.mxu0
        %1230 = vdwg.mxu0
        %v1247 = vunpack.c.l.b16 %v1011
        %v1248 = vunpack.c.l.b16 %v1012
        %v1249 = vunpack.c.l.b16 %v1013
        %v1250 = vunpack.c.l.b16 %v1014
        %v1251 = vunpack.c.l.b16 %v1015
        %v1252 = vunpack.c.l.b16 %v1016
        %v1253 = vunpack.c.l.b16 %v1017
        %v1254 = vunpack.c.l.b16 %v1018
        %v1255 = vunpack.c.l.b16 %v1019
        %v1256 = vunpack.c.l.b16 %v1020
        %v1257 = vunpack.c.l.b16 %v1021
        %v1258 = vunpack.c.l.b16 %v1022
        %v1259 = vunpack.c.l.b16 %v1023
        %v1260 = vunpack.c.l.b16 %v1024
        %v1261 = vunpack.c.l.b16 %v1025
        %v1262 = vunpack.c.l.b16 %v1026
        %v1263 = vpack.c.b16 %v1248, %v1247
        %v1264 = vpack.c.b16 %v1250, %v1249
        %v1265 = vpack.c.b16 %v1252, %v1251
        %v1266 = vpack.c.b16 %v1254, %v1253
        %v1267 = vpack.c.b16 %v1256, %v1255
        %v1268 = vpack.c.b16 %v1258, %v1257
        %v1269 = vpack.c.b16 %v1260, %v1259
        %v1270 = vpack.c.b16 %v1262, %v1261
        %1279 = vmatprep.subr.bf16.mxu0 0
        %1280 = vmatpush1.bf16.msra.mxu0 %v1270
        %1281 = vmatprep.subr.bf16.mxu0 0
        %1282 = vmatpush1.bf16.msra.mxu0 %v1269
        %1283 = vmatprep.subr.bf16.mxu0 0
        %1284 = vmatpush1.bf16.msra.mxu0 %v1268
        %1285 = vmatprep.subr.bf16.mxu0 0
        %1286 = vmatpush1.bf16.msra.mxu0 %v1267
        %1287 = vmatprep.subr.bf16.mxu0 0
        %1288 = vmatpush1.bf16.msra.mxu0 %v1266
        %1289 = vmatprep.subr.bf16.mxu0 0
        %1290 = vmatpush1.bf16.msra.mxu0 %v1265
        %1291 = vmatprep.subr.bf16.mxu0 0
        %1292 = vmatpush1.bf16.msra.mxu0 %v1264
        %1293 = vmatprep.subr.bf16.mxu0 0
        %1294 = vmatpush1.bf16.msra.mxu0 %v1263
        %1295 = vmatprep.subr.bf16.mxu0 0
        %1296 = vmatpush2.bf16.msra.mxu0 0
        %1297 = vmatprep.subr.bf16.mxu0 0
        %1298 = vmatpush2.bf16.msra.mxu0 0
        %1299 = vmatprep.subr.bf16.mxu0 0
        %1300 = vmatpush2.bf16.msra.mxu0 0
        %1301 = vmatprep.subr.bf16.mxu0 0
        %1302 = vmatpush2.bf16.msra.mxu0 0
        %1303 = vmatprep.subr.bf16.mxu0 0
        %1304 = vmatpush2.bf16.msra.mxu0 0
        %1305 = vmatprep.subr.bf16.mxu0 0
        %1306 = vmatpush2.bf16.msra.mxu0 0
        %1307 = vmatprep.subr.bf16.mxu0 0
        %1308 = vmatpush2.bf16.msra.mxu0 0
        %1309 = vmatprep.subr.bf16.mxu0 0
        %1310 = vmatpush2.bf16.msra.mxu0 0
        %1311 = vmatprep.mubr.bf16.mxu0 0
        %1312 = vmatmul.mubr.bf16.gmra.mxu0 %v1010
        %v1313 = vpop.f32.mrf.mxu0
        %v1314 = vadd.f32 %v1226, %v1313
        %v1315 = vpop.f32.mrf.mxu0
        %v1316 = vpop.f32.mrf.mxu0
        %v1317 = vpop.f32.mrf.mxu0
        %1318 = vdwg.mxu0
        %1319 = vmatprep.subr.bf16.mxu0 0
        %1320 = vmatpush1.bf16.xpose.msra.mxu0 0
        %1321 = vmatprep.subr.bf16.mxu0 0
        %1322 = vmatpush1.bf16.xpose.msra.mxu0 0
        %1323 = vmatprep.subr.bf16.mxu0 0
        %1324 = vmatpush1.bf16.xpose.msra.mxu0 0
        %1325 = vmatprep.subr.bf16.mxu0 0
        %1326 = vmatpush1.bf16.xpose.msra.mxu0 0
        %1327 = vmatprep.subr.bf16.mxu0 0
        %1328 = vmatpush1.bf16.xpose.msra.mxu0 0
        %1329 = vmatprep.subr.bf16.mxu0 0
        %1330 = vmatpush1.bf16.xpose.msra.mxu0 0
        %1331 = vmatprep.subr.bf16.mxu0 0
        %1332 = vmatpush1.bf16.xpose.msra.mxu0 0
        %1333 = vmatprep.subr.bf16.mxu0 0
        %1334 = vmatpush1.bf16.xpose.msra.mxu0 %v903
        %1335 = vmatprep.subr.bf16.mxu0 0
        %1336 = vmatpush2.bf16.xpose.msra.mxu0 0
        %1337 = vmatprep.subr.bf16.mxu0 0
        %1338 = vmatpush2.bf16.xpose.msra.mxu0 0
        %1339 = vmatprep.subr.bf16.mxu0 0
        %1340 = vmatpush2.bf16.xpose.msra.mxu0 0
        %1341 = vmatprep.subr.bf16.mxu0 0
        %1342 = vmatpush2.bf16.xpose.msra.mxu0 0
        %1343 = vmatprep.subr.bf16.mxu0 0
        %1344 = vmatpush2.bf16.xpose.msra.mxu0 0
        %1345 = vmatprep.subr.bf16.mxu0 0
        %1346 = vmatpush2.bf16.xpose.msra.mxu0 0
        %1347 = vmatprep.subr.bf16.mxu0 0
        %1348 = vmatpush2.bf16.xpose.msra.mxu0 0
        %1349 = vmatprep.subr.bf16.mxu0 0
        %1350 = vmatpush2.bf16.xpose.msra.mxu0 0
        %1351 = vmatprep.mubr.bf16.mxu0 0
        %1352 = vmatmul.mubr.bf16.gmra.mxu0 %v899
        %v1353 = vpop.f32.mrf.mxu0
        %v1354 = vadd.f32 0.0, %v1353
        %v1355 = vpop.f32.mrf.mxu0
        %v1356 = vpop.f32.mrf.mxu0
        %v1357 = vpop.f32.mrf.mxu0
        %1358 = vdwg.mxu0
        %v1359 = vmul.f32 %v1354, 0.35355338
        %v1360 = vsel %vm950, %v1359, -inf
        %1361 = vmax.xlane.f32.xlu0 %v1360
        %v1362 = vpop.xlane.xlu0 %1361
        %v1363 = vsub.f32 %v1359, %v1362
        %v1364 = vmul.f32 %v1363, 1.442695
        %v1365 = vpow.pop %v1364
        %v1366 = vsel %vm950, %v1365, 0.0
        %1367 = vadd.xlane.f32.xlu0 %v1366
        %v1368 = vpop.xlane.xlu0 %1367
        %v1369 = vrcp.pop %v1368
        %v1370 = vmul.f32 %v1365, %v1369
        %v1371 = vpack.c.bf16 %v1370, %v1370
        %v1373 = vsel %vm950, %v1371, 0
        %v1376 = vsel %vm966, %v907, 0
        %1378 = vmatprep.subr.bf16.mxu0 0
        %1379 = vmatpush1.bf16.msra.mxu0 0
        %1380 = vmatprep.subr.bf16.mxu0 0
        %1381 = vmatpush1.bf16.msra.mxu0 0
        %1382 = vmatprep.subr.bf16.mxu0 0
        %1383 = vmatpush1.bf16.msra.mxu0 0
        %1384 = vmatprep.subr.bf16.mxu0 0
        %1385 = vmatpush1.bf16.msra.mxu0 0
        %1386 = vmatprep.subr.bf16.mxu0 0
        %1387 = vmatpush1.bf16.msra.mxu0 0
        %1388 = vmatprep.subr.bf16.mxu0 0
        %1389 = vmatpush1.bf16.msra.mxu0 0
        %1390 = vmatprep.subr.bf16.mxu0 0
        %1391 = vmatpush1.bf16.msra.mxu0 0
        %1392 = vmatprep.subr.bf16.mxu0 0
        %1393 = vmatpush1.bf16.msra.mxu0 %v1376
        %1394 = vmatprep.subr.bf16.mxu0 0
        %1395 = vmatpush2.bf16.msra.mxu0 0
        %1396 = vmatprep.subr.bf16.mxu0 0
        %1397 = vmatpush2.bf16.msra.mxu0 0
        %1398 = vmatprep.subr.bf16.mxu0 0
        %1399 = vmatpush2.bf16.msra.mxu0 0
        %1400 = vmatprep.subr.bf16.mxu0 0
        %1401 = vmatpush2.bf16.msra.mxu0 0
        %1402 = vmatprep.subr.bf16.mxu0 0
        %1403 = vmatpush2.bf16.msra.mxu0 0
        %1404 = vmatprep.subr.bf16.mxu0 0
        %1405 = vmatpush2.bf16.msra.mxu0 0
        %1406 = vmatprep.subr.bf16.mxu0 0
        %1407 = vmatpush2.bf16.msra.mxu0 0
        %1408 = vmatprep.subr.bf16.mxu0 0
        %1409 = vmatpush2.bf16.msra.mxu0 0
        %1410 = vmatprep.mubr.bf16.mxu0 0
        %1411 = vmatmul.mubr.bf16.gmra.mxu0 %v1373
        %v1412 = vpop.f32.mrf.mxu0
        %v1413 = vadd.f32 0.0, %v1412
        %v1414 = vpop.f32.mrf.mxu0
        %v1415 = vpop.f32.mrf.mxu0
        %v1416 = vpop.f32.mrf.mxu0
        %1417 = vdwg.mxu0
        %v1418 = vpack.c.bf16 %v1413, %v1413
        %v1419 = vld [vmem:[%s3 + $0x80] sm:$0xf]
        %v1420 = vld [vmem:[%s3 + $0x84] sm:$0xf]
        %v1421 = vld [vmem:[%s3 + $0x88] sm:$0xf]
        %v1422 = vld [vmem:[%s3 + $0x8c] sm:$0xf]
        %v1423 = vld [vmem:[%s3 + $0x90] sm:$0xf]
        %v1424 = vld [vmem:[%s3 + $0x94] sm:$0xf]
        %v1425 = vld [vmem:[%s3 + $0x98] sm:$0xf]
        %v1426 = vld [vmem:[%s3 + $0x9c] sm:$0xf]
        %v1427 = vld [vmem:[%s3 + $0xa0] sm:$0xf]
        %v1428 = vld [vmem:[%s3 + $0xa4] sm:$0xf]
        %v1429 = vld [vmem:[%s3 + $0xa8] sm:$0xf]
        %v1430 = vld [vmem:[%s3 + $0xac] sm:$0xf]
        %v1431 = vld [vmem:[%s3 + $0xb0] sm:$0xf]
        %v1432 = vld [vmem:[%s3 + $0xb4] sm:$0xf]
        %v1433 = vld [vmem:[%s3 + $0xb8] sm:$0xf]
        %v1434 = vld [vmem:[%s3 + $0xbc] sm:$0xf]
        %v1451 = vunpack.c.l.b16 %v1419
        %v1452 = vunpack.c.l.b16 %v1420
        %v1453 = vunpack.c.l.b16 %v1421
        %v1454 = vunpack.c.l.b16 %v1422
        %v1455 = vunpack.c.l.b16 %v1423
        %v1456 = vunpack.c.l.b16 %v1424
        %v1457 = vunpack.c.l.b16 %v1425
        %v1458 = vunpack.c.l.b16 %v1426
        %v1459 = vunpack.c.l.b16 %v1427
        %v1460 = vunpack.c.l.b16 %v1428
        %v1461 = vunpack.c.l.b16 %v1429
        %v1462 = vunpack.c.l.b16 %v1430
        %v1463 = vunpack.c.l.b16 %v1431
        %v1464 = vunpack.c.l.b16 %v1432
        %v1465 = vunpack.c.l.b16 %v1433
        %v1466 = vunpack.c.l.b16 %v1434
        %v1467 = vpack.c.b16 %v1452, %v1451
        %v1468 = vpack.c.b16 %v1454, %v1453
        %v1469 = vpack.c.b16 %v1456, %v1455
        %v1470 = vpack.c.b16 %v1458, %v1457
        %v1471 = vpack.c.b16 %v1460, %v1459
        %v1472 = vpack.c.b16 %v1462, %v1461
        %v1473 = vpack.c.b16 %v1464, %v1463
        %v1474 = vpack.c.b16 %v1466, %v1465
        %1483 = vmatprep.subr.bf16.mxu0 0
        %1484 = vmatpush1.bf16.msra.mxu0 %v1474
        %1485 = vmatprep.subr.bf16.mxu0 0
        %1486 = vmatpush1.bf16.msra.mxu0 %v1473
        %1487 = vmatprep.subr.bf16.mxu0 0
        %1488 = vmatpush1.bf16.msra.mxu0 %v1472
        %1489 = vmatprep.subr.bf16.mxu0 0
        %1490 = vmatpush1.bf16.msra.mxu0 %v1471
        %1491 = vmatprep.subr.bf16.mxu0 0
        %1492 = vmatpush1.bf16.msra.mxu0 %v1470
        %1493 = vmatprep.subr.bf16.mxu0 0
        %1494 = vmatpush1.bf16.msra.mxu0 %v1469
        %1495 = vmatprep.subr.bf16.mxu0 0
        %1496 = vmatpush1.bf16.msra.mxu0 %v1468
        %1497 = vmatprep.subr.bf16.mxu0 0
        %1498 = vmatpush1.bf16.msra.mxu0 %v1467
        %1499 = vmatprep.subr.bf16.mxu0 0
        %1500 = vmatpush2.bf16.msra.mxu0 0
        %1501 = vmatprep.subr.bf16.mxu0 0
        %1502 = vmatpush2.bf16.msra.mxu0 0
        %1503 = vmatprep.subr.bf16.mxu0 0
        %1504 = vmatpush2.bf16.msra.mxu0 0
        %1505 = vmatprep.subr.bf16.mxu0 0
        %1506 = vmatpush2.bf16.msra.mxu0 0
        %1507 = vmatprep.subr.bf16.mxu0 0
        %1508 = vmatpush2.bf16.msra.mxu0 0
        %1509 = vmatprep.subr.bf16.mxu0 0
        %1510 = vmatpush2.bf16.msra.mxu0 0
        %1511 = vmatprep.subr.bf16.mxu0 0
        %1512 = vmatpush2.bf16.msra.mxu0 0
        %1513 = vmatprep.subr.bf16.mxu0 0
        %1514 = vmatpush2.bf16.msra.mxu0 0
        %1515 = vmatprep.mubr.bf16.mxu0 0
        %1516 = vmatmul.mubr.bf16.gmra.mxu0 %v1418
        %v1517 = vpop.f32.mrf.mxu0
        %v1518 = vadd.f32 0.0, %v1517
        %v1519 = vpop.f32.mrf.mxu0
        %v1520 = vpop.f32.mrf.mxu0
        %v1521 = vpop.f32.mrf.mxu0
        %1522 = vdwg.mxu0
        %v1523 = vadd.f32 %v1314, %v1518
        %1524 = vmatprep.subr.bf16.mxu0 0
        %1525 = vmatpush1.bf16.xpose.msra.mxu0 0
        %1526 = vmatprep.subr.bf16.mxu0 0
        %1527 = vmatpush1.bf16.xpose.msra.mxu0 0
        %1528 = vmatprep.subr.bf16.mxu0 0
        %1529 = vmatpush1.bf16.xpose.msra.mxu0 0
        %1530 = vmatprep.subr.bf16.mxu0 0
        %1531 = vmatpush1.bf16.xpose.msra.mxu0 0
        %1532 = vmatprep.subr.bf16.mxu0 0
        %1533 = vmatpush1.bf16.xpose.msra.mxu0 0
        %1534 = vmatprep.subr.bf16.mxu0 0
        %1535 = vmatpush1.bf16.xpose.msra.mxu0 0
        %1536 = vmatprep.subr.bf16.mxu0 0
        %1537 = vmatpush1.bf16.xpose.msra.mxu0 0
        %1538 = vmatprep.subr.bf16.mxu0 0
        %1539 = vmatpush1.bf16.xpose.msra.mxu0 %v904
        %1540 = vmatprep.subr.bf16.mxu0 0
        %1541 = vmatpush2.bf16.xpose.msra.mxu0 0
        %1542 = vmatprep.subr.bf16.mxu0 0
        %1543 = vmatpush2.bf16.xpose.msra.mxu0 0
        %1544 = vmatprep.subr.bf16.mxu0 0
        %1545 = vmatpush2.bf16.xpose.msra.mxu0 0
        %1546 = vmatprep.subr.bf16.mxu0 0
        %1547 = vmatpush2.bf16.xpose.msra.mxu0 0
        %1548 = vmatprep.subr.bf16.mxu0 0
        %1549 = vmatpush2.bf16.xpose.msra.mxu0 0
        %1550 = vmatprep.subr.bf16.mxu0 0
        %1551 = vmatpush2.bf16.xpose.msra.mxu0 0
        %1552 = vmatprep.subr.bf16.mxu0 0
        %1553 = vmatpush2.bf16.xpose.msra.mxu0 0
        %1554 = vmatprep.subr.bf16.mxu0 0
        %1555 = vmatpush2.bf16.xpose.msra.mxu0 0
        %1556 = vmatprep.mubr.bf16.mxu0 0
        %1557 = vmatmul.mubr.bf16.gmra.mxu0 %v900
        %v1558 = vpop.f32.mrf.mxu0
        %v1559 = vadd.f32 0.0, %v1558
        %v1560 = vpop.f32.mrf.mxu0
        %v1561 = vpop.f32.mrf.mxu0
        %v1562 = vpop.f32.mrf.mxu0
        %1563 = vdwg.mxu0
        %v1564 = vmul.f32 %v1559, 0.35355338
        %v1565 = vsel %vm950, %v1564, -inf
        %1566 = vmax.xlane.f32.xlu0 %v1565
        %v1567 = vpop.xlane.xlu0 %1566
        %v1568 = vsub.f32 %v1564, %v1567
        %v1569 = vmul.f32 %v1568, 1.442695
        %v1570 = vpow.pop %v1569
        %v1571 = vsel %vm950, %v1570, 0.0
        %1572 = vadd.xlane.f32.xlu0 %v1571
        %v1573 = vpop.xlane.xlu0 %1572
        %v1574 = vrcp.pop %v1573
        %v1575 = vmul.f32 %v1570, %v1574
        %v1576 = vpack.c.bf16 %v1575, %v1575
        %v1578 = vsel %vm950, %v1576, 0
        %v1581 = vsel %vm966, %v908, 0
        %1583 = vmatprep.subr.bf16.mxu0 0
        %1584 = vmatpush1.bf16.msra.mxu0 0
        %1585 = vmatprep.subr.bf16.mxu0 0
        %1586 = vmatpush1.bf16.msra.mxu0 0
        %1587 = vmatprep.subr.bf16.mxu0 0
        %1588 = vmatpush1.bf16.msra.mxu0 0
        %1589 = vmatprep.subr.bf16.mxu0 0
        %1590 = vmatpush1.bf16.msra.mxu0 0
        %1591 = vmatprep.subr.bf16.mxu0 0
        %1592 = vmatpush1.bf16.msra.mxu0 0
        %1593 = vmatprep.subr.bf16.mxu0 0
        %1594 = vmatpush1.bf16.msra.mxu0 0
        %1595 = vmatprep.subr.bf16.mxu0 0
        %1596 = vmatpush1.bf16.msra.mxu0 0
        %1597 = vmatprep.subr.bf16.mxu0 0
        %1598 = vmatpush1.bf16.msra.mxu0 %v1581
        %1599 = vmatprep.subr.bf16.mxu0 0
        %1600 = vmatpush2.bf16.msra.mxu0 0
        %1601 = vmatprep.subr.bf16.mxu0 0
        %1602 = vmatpush2.bf16.msra.mxu0 0
        %1603 = vmatprep.subr.bf16.mxu0 0
        %1604 = vmatpush2.bf16.msra.mxu0 0
        %1605 = vmatprep.subr.bf16.mxu0 0
        %1606 = vmatpush2.bf16.msra.mxu0 0
        %1607 = vmatprep.subr.bf16.mxu0 0
        %1608 = vmatpush2.bf16.msra.mxu0 0
        %1609 = vmatprep.subr.bf16.mxu0 0
        %1610 = vmatpush2.bf16.msra.mxu0 0
        %1611 = vmatprep.subr.bf16.mxu0 0
        %1612 = vmatpush2.bf16.msra.mxu0 0
        %1613 = vmatprep.subr.bf16.mxu0 0
        %1614 = vmatpush2.bf16.msra.mxu0 0
        %1615 = vmatprep.mubr.bf16.mxu0 0
        %1616 = vmatmul.mubr.bf16.gmra.mxu0 %v1578
        %v1617 = vpop.f32.mrf.mxu0
        %v1618 = vadd.f32 0.0, %v1617
        %v1619 = vpop.f32.mrf.mxu0
        %v1620 = vpop.f32.mrf.mxu0
        %v1621 = vpop.f32.mrf.mxu0
        %1622 = vdwg.mxu0
        %v1623 = vpack.c.bf16 %v1618, %v1618
        %v1624 = vld [vmem:[%s3 + $0xc0] sm:$0xf]
        %v1625 = vld [vmem:[%s3 + $0xc4] sm:$0xf]
        %v1626 = vld [vmem:[%s3 + $0xc8] sm:$0xf]
        %v1627 = vld [vmem:[%s3 + $0xcc] sm:$0xf]
        %v1628 = vld [vmem:[%s3 + $0xd0] sm:$0xf]
        %v1629 = vld [vmem:[%s3 + $0xd4] sm:$0xf]
        %v1630 = vld [vmem:[%s3 + $0xd8] sm:$0xf]
        %v1631 = vld [vmem:[%s3 + $0xdc] sm:$0xf]
        %v1632 = vld [vmem:[%s3 + $0xe0] sm:$0xf]
        %v1633 = vld [vmem:[%s3 + $0xe4] sm:$0xf]
        %v1634 = vld [vmem:[%s3 + $0xe8] sm:$0xf]
        %v1635 = vld [vmem:[%s3 + $0xec] sm:$0xf]
        %v1636 = vld [vmem:[%s3 + $0xf0] sm:$0xf]
        %v1637 = vld [vmem:[%s3 + $0xf4] sm:$0xf]
        %v1638 = vld [vmem:[%s3 + $0xf8] sm:$0xf]
        %v1639 = vld [vmem:[%s3 + $0xfc] sm:$0xf]
        %v1656 = vunpack.c.l.b16 %v1624
        %v1657 = vunpack.c.l.b16 %v1625
        %v1658 = vunpack.c.l.b16 %v1626
        %v1659 = vunpack.c.l.b16 %v1627
        %v1660 = vunpack.c.l.b16 %v1628
        %v1661 = vunpack.c.l.b16 %v1629
        %v1662 = vunpack.c.l.b16 %v1630
        %v1663 = vunpack.c.l.b16 %v1631
        %v1664 = vunpack.c.l.b16 %v1632
        %v1665 = vunpack.c.l.b16 %v1633
        %v1666 = vunpack.c.l.b16 %v1634
        %v1667 = vunpack.c.l.b16 %v1635
        %v1668 = vunpack.c.l.b16 %v1636
        %v1669 = vunpack.c.l.b16 %v1637
        %v1670 = vunpack.c.l.b16 %v1638
        %v1671 = vunpack.c.l.b16 %v1639
        %v1672 = vpack.c.b16 %v1657, %v1656
        %v1673 = vpack.c.b16 %v1659, %v1658
        %v1674 = vpack.c.b16 %v1661, %v1660
        %v1675 = vpack.c.b16 %v1663, %v1662
        %v1676 = vpack.c.b16 %v1665, %v1664
        %v1677 = vpack.c.b16 %v1667, %v1666
        %v1678 = vpack.c.b16 %v1669, %v1668
        %v1679 = vpack.c.b16 %v1671, %v1670
        %1688 = vmatprep.subr.bf16.mxu0 0
        %1689 = vmatpush1.bf16.msra.mxu0 %v1679
        %1690 = vmatprep.subr.bf16.mxu0 0
        %1691 = vmatpush1.bf16.msra.mxu0 %v1678
        %1692 = vmatprep.subr.bf16.mxu0 0
        %1693 = vmatpush1.bf16.msra.mxu0 %v1677
        %1694 = vmatprep.subr.bf16.mxu0 0
        %1695 = vmatpush1.bf16.msra.mxu0 %v1676
        %1696 = vmatprep.subr.bf16.mxu0 0
        %1697 = vmatpush1.bf16.msra.mxu0 %v1675
        %1698 = vmatprep.subr.bf16.mxu0 0
        %1699 = vmatpush1.bf16.msra.mxu0 %v1674
        %1700 = vmatprep.subr.bf16.mxu0 0
        %1701 = vmatpush1.bf16.msra.mxu0 %v1673
        %1702 = vmatprep.subr.bf16.mxu0 0
        %1703 = vmatpush1.bf16.msra.mxu0 %v1672
        %1704 = vmatprep.subr.bf16.mxu0 0
        %1705 = vmatpush2.bf16.msra.mxu0 0
        %1706 = vmatprep.subr.bf16.mxu0 0
        %1707 = vmatpush2.bf16.msra.mxu0 0
        %1708 = vmatprep.subr.bf16.mxu0 0
        %1709 = vmatpush2.bf16.msra.mxu0 0
        %1710 = vmatprep.subr.bf16.mxu0 0
        %1711 = vmatpush2.bf16.msra.mxu0 0
        %1712 = vmatprep.subr.bf16.mxu0 0
        %1713 = vmatpush2.bf16.msra.mxu0 0
        %1714 = vmatprep.subr.bf16.mxu0 0
        %1715 = vmatpush2.bf16.msra.mxu0 0
        %1716 = vmatprep.subr.bf16.mxu0 0
        %1717 = vmatpush2.bf16.msra.mxu0 0
        %1718 = vmatprep.subr.bf16.mxu0 0
        %1719 = vmatpush2.bf16.msra.mxu0 0
        %1720 = vmatprep.mubr.bf16.mxu0 0
        %1721 = vmatmul.mubr.bf16.gmra.mxu0 %v1623
        %v1722 = vpop.f32.mrf.mxu0
        %v1723 = vadd.f32 0.0, %v1722
        %v1724 = vpop.f32.mrf.mxu0
        %v1725 = vpop.f32.mrf.mxu0
        %v1726 = vpop.f32.mrf.mxu0
        %1727 = vdwg.mxu0
        %v1728 = vadd.f32 %v1523, %v1723
        %v1729 = vld [vmem:[%s4] sm:$0x1]
        %v1731 = vlaneseq
        %v1732 = vshrl.u32 %v1731, 7
        %v1733 = vsub.s32 0, %v1732
        %v1734 = vrot.slane %v1729, %v1733
        %v1736 = vadd.f32 %v1728, %v1734
        %v1737 = vadd.f32 %v437, %v1736
        %v1738 = vsel %vm647, %v1737, 0.0
        %1739 = vadd.xlane.f32.xlu0 %v1738
        %v1740 = vpop.xlane.xlu0 %1739
        %v1741 = vrcp.pop 32.0
        %v1742 = vmul.f32 %v1740, %v1741
        %v1743 = vmul.f32 %v1737, %v1737
        %v1744 = vsel %vm647, %v1743, 0.0
        %1745 = vadd.xlane.f32.xlu0 %v1744
        %v1746 = vpop.xlane.xlu0 %1745
        %v1747 = vmul.f32 %v1746, %v1741
        %v1748 = vmul.f32 %v1742, %v1742
        %v1749 = vsub.f32 %v1747, %v1748
        %v1750 = vsub.f32 %v1737, %v1742
        %v1751 = vadd.f32 %v1749, 1e-05
        %v1752 = vrsqrt.pop %v1751
        %v1753 = vmul.f32 %v1750, %v1752
        %v1754 = vld [vmem:[%s5] sm:$0x1]
        %v1756 = vlaneseq
        %v1757 = vshrl.u32 %v1756, 7
        %v1758 = vsub.s32 0, %v1757
        %v1759 = vrot.slane %v1754, %v1758
        %v1761 = vmul.f32 %v1753, %v1759
        %v1762 = vld [vmem:[%s6] sm:$0x1]
        %v1764 = vlaneseq
        %v1765 = vshrl.u32 %v1764, 7
        %v1766 = vsub.s32 0, %v1765
        %v1767 = vrot.slane %v1762, %v1766
        %v1769 = vadd.f32 %v1761, %v1767
        %v1770 = vpack.c.bf16 %v1769, %v1769
        %v1771 = vld [vmem:[%s7] sm:$0xf]
        %v1772 = vld [vmem:[%s7 + $0x4] sm:$0xf]
        %v1773 = vld [vmem:[%s7 + $0x8] sm:$0xf]
        %v1774 = vld [vmem:[%s7 + $0xc] sm:$0xf]
        %v1775 = vld [vmem:[%s8] sm:$0x1]
        %v1777 = vlaneseq
        %v1778 = vshrl.u32 %v1777, 7
        %v1779 = vsub.s32 0, %v1778
        %v1780 = vrot.slane %v1775, %v1779
        %v1786 = vunpack.c.l.b16 %v1771
        %v1787 = vunpack.c.l.b16 %v1772
        %v1788 = vunpack.c.l.b16 %v1773
        %v1789 = vunpack.c.l.b16 %v1774
        %v1790 = vpack.c.b16 %v1787, %v1786
        %v1791 = vpack.c.b16 %v1789, %v1788
        %v1795 = vsel %vm647, %v1770, 0
        %1797 = vmatprep.subr.bf16.mxu0 0
        %1798 = vmatpush1.bf16.msra.mxu0 0
        %1799 = vmatprep.subr.bf16.mxu0 0
        %1800 = vmatpush1.bf16.msra.mxu0 0
        %1801 = vmatprep.subr.bf16.mxu0 0
        %1802 = vmatpush1.bf16.msra.mxu0 0
        %1803 = vmatprep.subr.bf16.mxu0 0
        %1804 = vmatpush1.bf16.msra.mxu0 0
        %1805 = vmatprep.subr.bf16.mxu0 0
        %1806 = vmatpush1.bf16.msra.mxu0 0
        %1807 = vmatprep.subr.bf16.mxu0 0
        %1808 = vmatpush1.bf16.msra.mxu0 0
        %1809 = vmatprep.subr.bf16.mxu0 0
        %1810 = vmatpush1.bf16.msra.mxu0 %v1791
        %1811 = vmatprep.subr.bf16.mxu0 0
        %1812 = vmatpush1.bf16.msra.mxu0 %v1790
        %1813 = vmatprep.subr.bf16.mxu0 0
        %1814 = vmatpush2.bf16.msra.mxu0 0
        %1815 = vmatprep.subr.bf16.mxu0 0
        %1816 = vmatpush2.bf16.msra.mxu0 0
        %1817 = vmatprep.subr.bf16.mxu0 0
        %1818 = vmatpush2.bf16.msra.mxu0 0
        %1819 = vmatprep.subr.bf16.mxu0 0
        %1820 = vmatpush2.bf16.msra.mxu0 0
        %1821 = vmatprep.subr.bf16.mxu0 0
        %1822 = vmatpush2.bf16.msra.mxu0 0
        %1823 = vmatprep.subr.bf16.mxu0 0
        %1824 = vmatpush2.bf16.msra.mxu0 0
        %1825 = vmatprep.subr.bf16.mxu0 0
        %1826 = vmatpush2.bf16.msra.mxu0 0
        %1827 = vmatprep.subr.bf16.mxu0 0
        %1828 = vmatpush2.bf16.msra.mxu0 0
        %1829 = vmatprep.mubr.bf16.mxu0 0
        %1830 = vmatmul.mubr.bf16.gmra.mxu0 %v1795
        %v1831 = vpop.f32.mrf.mxu0
        %v1832 = vadd.f32 %v1780, %v1831
        %v1833 = vpop.f32.mrf.mxu0
        %v1834 = vpop.f32.mrf.mxu0
        %v1835 = vpop.f32.mrf.mxu0
        %1836 = vdwg.mxu0
        %v1837 = vmax.f32 %v1832, 0.0
        %v1838 = vpack.c.bf16 %v1837, %v1837
        %v1839 = vld [vmem:[%s9] sm:$0xf]
        %v1840 = vld [vmem:[%s9 + $0x4] sm:$0xf]
        %v1841 = vld [vmem:[%s9 + $0x8] sm:$0xf]
        %v1842 = vld [vmem:[%s9 + $0xc] sm:$0xf]
        %v1843 = vld [vmem:[%s9 + $0x10] sm:$0xf]
        %v1844 = vld [vmem:[%s9 + $0x14] sm:$0xf]
        %v1845 = vld [vmem:[%s9 + $0x18] sm:$0xf]
        %v1846 = vld [vmem:[%s9 + $0x1c] sm:$0xf]
        %v1847 = vld [vmem:[%s10] sm:$0x1]
        %v1849 = vlaneseq
        %v1850 = vshrl.u32 %v1849, 7
        %v1851 = vsub.s32 0, %v1850
        %v1852 = vrot.slane %v1847, %v1851
        %v1862 = vunpack.c.l.b16 %v1839
        %v1863 = vunpack.c.l.b16 %v1840
        %v1864 = vunpack.c.l.b16 %v1841
        %v1865 = vunpack.c.l.b16 %v1842
        %v1866 = vunpack.c.l.b16 %v1843
        %v1867 = vunpack.c.l.b16 %v1844
        %v1868 = vunpack.c.l.b16 %v1845
        %v1869 = vunpack.c.l.b16 %v1846
        %v1870 = vpack.c.b16 %v1863, %v1862
        %v1871 = vpack.c.b16 %v1865, %v1864
        %v1872 = vpack.c.b16 %v1867, %v1866
        %v1873 = vpack.c.b16 %v1869, %v1868
        %vm1878 = vcmask 523264
        %v1880 = vsel %vm1878, %v1838, 0
        %1882 = vmatprep.subr.bf16.mxu0 0
        %1883 = vmatpush1.bf16.msra.mxu0 0
        %1884 = vmatprep.subr.bf16.mxu0 0
        %1885 = vmatpush1.bf16.msra.mxu0 0
        %1886 = vmatprep.subr.bf16.mxu0 0
        %1887 = vmatpush1.bf16.msra.mxu0 0
        %1888 = vmatprep.subr.bf16.mxu0 0
        %1889 = vmatpush1.bf16.msra.mxu0 0
        %1890 = vmatprep.subr.bf16.mxu0 0
        %1891 = vmatpush1.bf16.msra.mxu0 %v1873
        %1892 = vmatprep.subr.bf16.mxu0 0
        %1893 = vmatpush1.bf16.msra.mxu0 %v1872
        %1894 = vmatprep.subr.bf16.mxu0 0
        %1895 = vmatpush1.bf16.msra.mxu0 %v1871
        %1896 = vmatprep.subr.bf16.mxu0 0
        %1897 = vmatpush1.bf16.msra.mxu0 %v1870
        %1898 = vmatprep.subr.bf16.mxu0 0
        %1899 = vmatpush2.bf16.msra.mxu0 0
        %1900 = vmatprep.subr.bf16.mxu0 0
        %1901 = vmatpush2.bf16.msra.mxu0 0
        %1902 = vmatprep.subr.bf16.mxu0 0
        %1903 = vmatpush2.bf16.msra.mxu0 0
        %1904 = vmatprep.subr.bf16.mxu0 0
        %1905 = vmatpush2.bf16.msra.mxu0 0
        %1906 = vmatprep.subr.bf16.mxu0 0
        %1907 = vmatpush2.bf16.msra.mxu0 0
        %1908 = vmatprep.subr.bf16.mxu0 0
        %1909 = vmatpush2.bf16.msra.mxu0 0
        %1910 = vmatprep.subr.bf16.mxu0 0
        %1911 = vmatpush2.bf16.msra.mxu0 0
        %1912 = vmatprep.subr.bf16.mxu0 0
        %1913 = vmatpush2.bf16.msra.mxu0 0
        %1914 = vmatprep.mubr.bf16.mxu0 0
        %1915 = vmatmul.mubr.bf16.gmra.mxu0 %v1880
        %v1916 = vpop.f32.mrf.mxu0
        %v1917 = vadd.f32 %v1852, %v1916
        %v1918 = vpop.f32.mrf.mxu0
        %v1919 = vpop.f32.mrf.mxu0
        %v1920 = vpop.f32.mrf.mxu0
        %1921 = vdwg.mxu0
        %v1922 = vadd.f32 %v1769, %v1917
        %v1923 = vsel %vm647, %v1922, 0.0
        %1924 = vadd.xlane.f32.xlu0 %v1923
        %v1925 = vpop.xlane.xlu0 %1924
        %v1926 = vmul.f32 %v1925, %v1741
        %v1927 = vmul.f32 %v1922, %v1922
        %v1928 = vsel %vm647, %v1927, 0.0
        %1929 = vadd.xlane.f32.xlu0 %v1928
        %v1930 = vpop.xlane.xlu0 %1929
        %v1931 = vmul.f32 %v1930, %v1741
        %v1932 = vmul.f32 %v1926, %v1926
        %v1933 = vsub.f32 %v1931, %v1932
        %v1934 = vsub.f32 %v1922, %v1926
        %v1935 = vadd.f32 %v1933, 1e-05
        %v1936 = vrsqrt.pop %v1935
        %v1937 = vmul.f32 %v1934, %v1936
        %v1938 = vld [vmem:[%s11] sm:$0x1]
        %v1940 = vlaneseq
        %v1941 = vshrl.u32 %v1940, 7
        %v1942 = vsub.s32 0, %v1941
        %v1943 = vrot.slane %v1938, %v1942
        %v1945 = vmul.f32 %v1937, %v1943
        %v1946 = vld [vmem:[%s12] sm:$0x1]
        %v1948 = vlaneseq
        %v1949 = vshrl.u32 %v1948, 7
        %v1950 = vsub.s32 0, %v1949
        %v1951 = vrot.slane %v1946, %v1950
        %v1953 = vadd.f32 %v1945, %v1951
        %1954 = vst.msk [vmem:[%s431] sm:$0xff] %vm647, %v1953
        %s1955 = sand.u32 %s313, 1
        %s1956 = scalar_lea.sflag [#allocation3], %s1955
        %s1957 = sand.u32 %s313, 1
        %s1958 = smul.addr %s1957, 8
        %s1959 = scalar_lea.vmem [#allocation2], %s1958
        // Predicated region
        $region73: #{encoder_layer_forward.1} parent=71 // pred_check
          %p1960 = pneg %p323
        $region74: #{encoder_layer_forward.1} parent=71 // pred_check_branch
          %1962 = sbr.rel (%p1960) target = $region76
        $region75: #{encoder_layer_forward.1} parent=71 // pred_region
          %s1964 = ssub.s32 128, 128
          %1965 = vsyncadd %s1956, %s1964
          %s1966 = smul.addr %s27, 128
          %s1967 = scalar_lea.hbm %s13, %s1966
          %s1969 = sshll.u32 %s1959, 4
          %s1970 = int_to_ptr.vmem [resolvable:$true] %s1969
          %1972 = dma.vmem_to_hbm [thread:$0]  %s1970, 128, %s1967, %s1956
        $region76: #{encoder_layer_forward.1} parent=71 // pred_fallthru
          _
      $region72: #{encoder_layer_forward.1} parent=5 // pred_fallthru
        _
      %p1973 = scmp.le.s32.totalorder 2, %s22
      // Predicated region
      $region77: #{encoder_layer_forward.1} parent=5 // pred_check
        %p1974 = pneg %p1973
      $region78: #{encoder_layer_forward.1} parent=5 // pred_check_branch
        %1976 = sbr.rel (%p1974) target = $region80
      $region79: #{encoder_layer_forward.1} parent=5 // pred_region
        %s1977 = ssub.s32 %s22, 2
        // Predicated region
        $region81: #{encoder_layer_forward.1} parent=79 // pred_check
          %p1978 = pneg %p329
        $region82: #{encoder_layer_forward.1} parent=79 // pred_check_branch
          %1980 = sbr.rel (%p1978) target = $region84
        $region83: #{encoder_layer_forward.1} parent=79 // pred_region
          %s1981 = sand.u32 %s314, 1
          %s1982 = scalar_lea.sflag [#allocation3], %s1981
          %s1983 = sand.u32 %s314, 1
          %s1984 = smul.addr %s1983, 8
          %s1985 = scalar_lea.vmem [#allocation2], %s1984
          %1986 = dma.done %s1982, 128
        $region84: #{encoder_layer_forward.1} parent=79 // pred_fallthru
          _
      $region80: #{encoder_layer_forward.1} parent=5 // pred_fallthru
        _
    $region6: #{encoder_layer_forward.1} parent=1 // loop_footer
      %s26 = sadd.s32 1, %s22
    $region7: #{encoder_layer_forward.1} parent=1 // loop_footer_branch
      %21 = sbr.rel target = $region3
    $region8: #{encoder_layer_forward.1} parent=1 // loop_exit
      _
    %1987 = vsyncpa [#allocation3], 1
    %s1988 = scalar_lea.sflag [#allocation3], 1
    %1989 = vsyncpa %s1988, 1

</llo_original>
